<compile_context>
chip_gen: v7x
topology: tpu7x:2x2x1
jax: 0.10.0
libtpu: 0.0.40
codegen_flags: <defaults>
</compile_context>

<pallas_src>
import jax
import jax.numpy as jnp
from jax.experimental import pallas as pl
from jax.experimental.pallas import tpu as pltpu


# ----------------------------------------------------------------------------
# Fused Pallas kernel
# ----------------------------------------------------------------------------
def make_decoder_kernel(num_layers: int, seq_len: int, batch_tile: int,
                        hidden: int):
    """Fused decoder kernel for a static (layers, S, B_tile, H) config.

    Ref layout (positional):
      inputs : x (S, B_tile, D)
               layer 0      : wih0_t (D, 4H) bf16, whh0_t (H, 4H) bf16, b0 (1,4H) f32
               layers >= 1  : wcat_l (2H, 4H) bf16, b_l (1, 4H) f32
               fc           : wfc_t (H, O) bf16, bfc (1, O) f32
      outputs: out (B_tile, O) f32
    (g-gate columns of all LSTM weights/biases are pre-scaled by 2.)
    """
    S, B, H = seq_len, batch_tile, hidden

    def gate_update(gates, c):
        # One full-vreg EUP push per step.  tanh(z) = 2*sigmoid(2z) - 1,
        # with the 2z pre-baked into the g-gate weight columns.
        s = jax.nn.sigmoid(gates)
        i_g = s[:, 0 * H:1 * H]
        f_g = s[:, 1 * H:2 * H]
        g_g = 2.0 * s[:, 2 * H:3 * H] - 1.0          # VPU, not a 2nd EUP push
        o_g = s[:, 3 * H:4 * H]
        c_new = f_g * c + i_g * g_g
        h_new = o_g * jnp.tanh(c_new)                # small (B,H) EUP push
        return h_new, c_new

    def kernel(*refs):
        x_ref = refs[0]
        wih0_ref, whh0_ref, b0_ref = refs[1], refs[2], refs[3]
        wcat_refs = [refs[4 + 2 * (l - 1)] for l in range(1, num_layers)]
        bl_refs = [refs[5 + 2 * (l - 1)] for l in range(1, num_layers)]
        base = 4 + 2 * (num_layers - 1)
        wfc_ref, bfc_ref, out_ref = refs[base], refs[base + 1], refs[base + 2]

        D = x_ref.shape[-1]

        # Hoisted layer-0 input projection + bias: one MXU call covering the
        # whole sequence, off the serial recurrence.
        xm = x_ref[...].reshape(S * B, D).astype(jnp.bfloat16)
        g0_all = (jnp.dot(xm, wih0_ref[...],
                          preferred_element_type=jnp.float32) + b0_ref[...])

        whh0 = whh0_ref[...]
        wcats = [r[...] for r in wcat_refs]
        bls = [r[...] for r in bl_refs]

        hs = [jnp.zeros((B, H), jnp.float32) for _ in range(num_layers)]
        cs = [jnp.zeros((B, H), jnp.float32) for _ in range(num_layers)]

        # Wavefront-interleaved recurrence (statically unrolled; h/c stay in
        # vector registers).  Layer 0 step t+1 is independent of layer >=1
        # step t, so the scheduler can overlap the chains.
        for t in range(S):
            gates0 = (g0_all[t * B:(t + 1) * B, :]
                      + jnp.dot(hs[0].astype(jnp.bfloat16), whh0,
                                preferred_element_type=jnp.float32))
            hs[0], cs[0] = gate_update(gates0, cs[0])
            for l in range(1, num_layers):
                # Concat trick: [h_{l-1,t} ; h_{l,t-1}] @ [Wih_l ; Whh_l]
                cat = jnp.concatenate([hs[l - 1], hs[l]],
                                      axis=1).astype(jnp.bfloat16)
                gates = (jnp.dot(cat, wcats[l - 1],
                                 preferred_element_type=jnp.float32)
                         + bls[l - 1])
                hs[l], cs[l] = gate_update(gates, cs[l])

        # fc_out: ReLU -> Linear on the last layer's final hidden state.
        relu_h = jnp.maximum(hs[-1], 0.0).astype(jnp.bfloat16)
        out_ref[...] = (jnp.dot(relu_h, wfc_ref[...],
                                preferred_element_type=jnp.float32)
                        + bfc_ref[...]).astype(out_ref.dtype)

    return kernel


# ----------------------------------------------------------------------------
# Wrapper
# ----------------------------------------------------------------------------
def _scale_g_cols(a, H):
    """Scale the g-gate (cell-candidate) columns by 2 so tanh can be recovered
    from a single sigmoid: tanh(z) = 2*sigmoid(2z) - 1."""
    return a.at[..., 2 * H:3 * H].multiply(2.0)


@jax.jit
def decoder_forward(params, x):
    """x: (seq, batch, hidden_num) -> (batch, out_size).  Single pallas_call."""
    S, B, D = x.shape
    lstm = params["lstm"]
    num_layers = len(lstm)
    H = lstm[0]["w_hh"].shape[1]
    O = params["fc"]["w"].shape[0]

    BT = 8                                     # sublane tile for the batch dim
    B_pad = ((B + BT - 1) // BT) * BT
    x_p = jnp.pad(x.astype(jnp.float32), ((0, 0), (0, B_pad - B), (0, 0)))

    # Build kernel operands: transposed, g-gate-scaled, bf16 weights; f32
    # combined biases; layers >= 1 packed as [Wih ; Whh] for the concat matmul.
    args = [x_p]
    in_specs = [pl.BlockSpec((S, BT, D), lambda i: (0, i, 0))]

    def full2d(arr):
        return pl.BlockSpec(arr.shape, lambda i: (0, 0))

    for l, p in enumerate(lstm):
        wih_t = _scale_g_cols(p["w_ih"].T, H).astype(jnp.bfloat16)   # (Din,4H)
        whh_t = _scale_g_cols(p["w_hh"].T, H).astype(jnp.bfloat16)   # (H, 4H)
        b = _scale_g_cols((p["b_ih"] + p["b_hh"]).reshape(1, -1), H)  # (1,4H)
        if l == 0:
            args += [wih_t, whh_t, b]
            in_specs += [full2d(wih_t), full2d(whh_t), full2d(b)]
        else:
            wcat = jnp.concatenate([wih_t, whh_t], axis=0)            # (2H,4H)
            args += [wcat, b]
            in_specs += [full2d(wcat), full2d(b)]

    wfc_t = params["fc"]["w"].T.astype(jnp.bfloat16)                  # (H, O)
    bfc = params["fc"]["b"].reshape(1, -1).astype(jnp.float32)        # (1, O)
    args += [wfc_t, bfc]
    in_specs += [full2d(wfc_t), full2d(bfc)]

    kernel = make_decoder_kernel(num_layers, S, BT, H)
    out_full = pl.pallas_call(
        kernel,
        out_shape=jax.ShapeDtypeStruct((B_pad, O), jnp.float32),
        grid_spec=pltpu.PrefetchScalarGridSpec(
            num_scalar_prefetch=0,
            grid=(B_pad // BT,),                 # batch tiles -> both v7x TCs
            in_specs=in_specs,
            out_specs=pl.BlockSpec((BT, O), lambda i: (i, 0)),
        ),
        compiler_params=pltpu.CompilerParams(
            dimension_semantics=("parallel",),
            vmem_limit_bytes=32 * 1024 * 1024,
        ),
    )(*args)
    return out_full[:B]                          # drop padded batch rows


# ----------------------------------------------------------------------------
# Params (PyTorch-style init, raw layout) and a pure-JAX f32 reference
# ----------------------------------------------------------------------------
def init_decoder_params(key, hidden_num, layers, out_size):
    """Deterministic PyTorch-style uniform(-1/sqrt(H), 1/sqrt(H)) init."""
    params = {"lstm": [], "fc": None}
    bound = 1.0 / float(hidden_num) ** 0.5
    for _ in range(layers):
        d_in = hidden_num  # input_size == hidden_num for every layer here
        key, k1, k2, k3, k4 = jax.random.split(key, 5)
        params["lstm"].append({
            "w_ih": jax.random.uniform(k1, (4 * hidden_num, d_in), jnp.float32,
                                       -bound, bound),
            "w_hh": jax.random.uniform(k2, (4 * hidden_num, hidden_num),
                                       jnp.float32, -bound, bound),
            "b_ih": jax.random.uniform(k3, (4 * hidden_num,), jnp.float32,
                                       -bound, bound),
            "b_hh": jax.random.uniform(k4, (4 * hidden_num,), jnp.float32,
                                       -bound, bound),
        })
    key, k1, k2 = jax.random.split(key, 3)
    params["fc"] = {
        "w": jax.random.uniform(k1, (out_size, hidden_num), jnp.float32,
                                -bound, bound),
        "b": jax.random.uniform(k2, (out_size,), jnp.float32, -bound, bound),
    }
    return params


def decoder_reference(params, x):
    """Pure-JAX reference (f32, highest-precision matmuls)."""
    S, B, _ = x.shape
    hi = jax.lax.Precision.HIGHEST
    layer_in = x.astype(jnp.float32)
    h = None
    for p in params["lstm"]:
        H = p["w_hh"].shape[1]
        w_ih_t, w_hh_t = p["w_ih"].T, p["w_hh"].T
        b = (p["b_ih"] + p["b_hh"]).reshape(1, -1)
        h = jnp.zeros((B, H), jnp.float32)
        c = jnp.zeros((B, H), jnp.float32)
        ys = []
        for t in range(S):
            gates = (jnp.dot(layer_in[t], w_ih_t, precision=hi) + b
                     + jnp.dot(h, w_hh_t, precision=hi))
            i_g = jax.nn.sigmoid(gates[:, 0 * H:1 * H])
            f_g = jax.nn.sigmoid(gates[:, 1 * H:2 * H])
            g_g = jnp.tanh(gates[:, 2 * H:3 * H])
            o_g = jax.nn.sigmoid(gates[:, 3 * H:4 * H])
            c = f_g * c + i_g * g_g
            h = o_g * jnp.tanh(c)
            ys.append(h)
        layer_in = jnp.stack(ys, axis=0)
    out = jnp.maximum(h, 0.0)
    return (jnp.dot(out, params["fc"]["w"].T, precision=hi)
            + params["fc"]["b"].reshape(1, -1))


# ----------------------------------------------------------------------------
# main
# ----------------------------------------------------------------------------
if __name__ == "__main__":
    # config: en.hidden_num=32, en.num_layers=2, output_size=16
    hidden_num = 32
    layers = 2
    out_size = 16
    seq_len = 8
    batch = 2

    key = jax.random.PRNGKey(0)
    key, kx, kp = jax.random.split(key, 3)
    x = jax.random.normal(kx, (seq_len, batch, hidden_num), jnp.float32)
    params = init_decoder_params(kp, hidden_num, layers, out_size)

    out = decoder_forward(params, x)
    jax.block_until_ready(out)
    assert out.shape == (batch, out_size)

    ref = decoder_reference(params, x)
    # Kernel feeds the MXU bf16 operands with f32 accumulation (documented
    # choice); compare against the f32-HIGHEST reference accordingly.
    assert jnp.allclose(out, ref, atol=1e-2, rtol=1e-2), (
        f"max abs err {jnp.max(jnp.abs(out - ref))}")

    print("KERNEL_OK")
</pallas_src>

<mosaic_0001>
module attributes {stable_mosaic.version = 11 : i64} {
  func.func @kernel(%arg0: i32, %arg1: memref<8x8x32xf32, #tpu.memory_space<vmem>>, %arg2: memref<32x128xbf16, #tpu.memory_space<vmem>>, %arg3: memref<32x128xbf16, #tpu.memory_space<vmem>>, %arg4: memref<1x128xf32, #tpu.memory_space<vmem>>, %arg5: memref<64x128xbf16, #tpu.memory_space<vmem>>, %arg6: memref<1x128xf32, #tpu.memory_space<vmem>>, %arg7: memref<32x16xbf16, #tpu.memory_space<vmem>>, %arg8: memref<1x16xf32, #tpu.memory_space<vmem>>, %arg9: memref<8x16xf32, #tpu.memory_space<vmem>>) attributes {dimension_semantics = [#tpu.dimension_semantics<parallel>], iteration_bounds = array<i64: 1>, scalar_prefetch = 0 : i64, scratch_operands = 0 : i64, tpu.core_type = #tpu.core_type<tc>, window_params = [{transform_indices = @transform_0, window_bounds = array<i64: 8, 8, 32>}, {pipeline_mode = #tpu.pipeline_mode<synchronous>, transform_indices = @transform_1, window_bounds = array<i64: 32, 128>}, {pipeline_mode = #tpu.pipeline_mode<synchronous>, transform_indices = @transform_2, window_bounds = array<i64: 32, 128>}, {pipeline_mode = #tpu.pipeline_mode<synchronous>, transform_indices = @transform_3, window_bounds = array<i64: 1, 128>}, {pipeline_mode = #tpu.pipeline_mode<synchronous>, transform_indices = @transform_4, window_bounds = array<i64: 64, 128>}, {pipeline_mode = #tpu.pipeline_mode<synchronous>, transform_indices = @transform_5, window_bounds = array<i64: 1, 128>}, {pipeline_mode = #tpu.pipeline_mode<synchronous>, transform_indices = @transform_6, window_bounds = array<i64: 32, 16>}, {pipeline_mode = #tpu.pipeline_mode<synchronous>, transform_indices = @transform_7, window_bounds = array<i64: 1, 16>}, {transform_indices = @transform_8, window_bounds = array<i64: 8, 16>}]} {
    %c0 = arith.constant 0 : index
    %c0_0 = arith.constant 0 : index
    %c0_1 = arith.constant 0 : index
    %0 = vector.load %arg1[%c0, %c0_0, %c0_1] : memref<8x8x32xf32, #tpu.memory_space<vmem>>, vector<8x8x32xf32>
    %1 = vector.shape_cast %0 : vector<8x8x32xf32> to vector<64x32xf32>
    %2 = arith.truncf %1 : vector<64x32xf32> to vector<64x32xbf16>
    %c0_2 = arith.constant 0 : index
    %c0_3 = arith.constant 0 : index
    %3 = vector.load %arg2[%c0_2, %c0_3] : memref<32x128xbf16, #tpu.memory_space<vmem>>, vector<32x128xbf16>
    %cst = arith.constant dense<0.000000e+00> : vector<64x128xf32>
    %4 = tpu.matmul %2, %3, %cst {dimension_numbers = #tpu.dot_dimension_numbers<[1], [0], [0], [1], [0, 0, 1, 1], [], []>} : vector<64x32xbf16>, vector<32x128xbf16>, vector<64x128xf32> -> vector<64x128xf32>
    %c0_4 = arith.constant 0 : index
    %c0_5 = arith.constant 0 : index
    %5 = vector.load %arg4[%c0_4, %c0_5] : memref<1x128xf32, #tpu.memory_space<vmem>>, vector<1x128xf32>
    %6 = vector.broadcast %5 : vector<1x128xf32> to vector<64x128xf32>
    %7 = arith.addf %4, %6 : vector<64x128xf32>
    %c0_6 = arith.constant 0 : index
    %c0_7 = arith.constant 0 : index
    %8 = vector.load %arg3[%c0_6, %c0_7] : memref<32x128xbf16, #tpu.memory_space<vmem>>, vector<32x128xbf16>
    %c0_8 = arith.constant 0 : index
    %c0_9 = arith.constant 0 : index
    %9 = vector.load %arg5[%c0_8, %c0_9] : memref<64x128xbf16, #tpu.memory_space<vmem>>, vector<64x128xbf16>
    %c0_10 = arith.constant 0 : index
    %c0_11 = arith.constant 0 : index
    %10 = vector.load %arg6[%c0_10, %c0_11] : memref<1x128xf32, #tpu.memory_space<vmem>>, vector<1x128xf32>
    %cst_12 = arith.constant 0.000000e+00 : f32
    %11 = vector.broadcast %cst_12 : f32 to vector<8x32xf32>
    %cst_13 = arith.constant 0.000000e+00 : f32
    %12 = vector.broadcast %cst_13 : f32 to vector<8x32xf32>
    %cst_14 = arith.constant 0.000000e+00 : f32
    %13 = vector.broadcast %cst_14 : f32 to vector<8x32xf32>
    %cst_15 = arith.constant 0.000000e+00 : f32
    %14 = vector.broadcast %cst_15 : f32 to vector<8x32xf32>
    %15 = vector.extract_strided_slice %7 {offsets = [0, 0], sizes = [8, 128], strides = [1, 1]} : vector<64x128xf32> to vector<8x128xf32>
    %16 = arith.truncf %11 : vector<8x32xf32> to vector<8x32xbf16>
    %cst_16 = arith.constant dense<0.000000e+00> : vector<8x128xf32>
    %17 = tpu.matmul %16, %8, %cst_16 {dimension_numbers = #tpu.dot_dimension_numbers<[1], [0], [0], [1], [0, 0, 1, 1], [], []>} : vector<8x32xbf16>, vector<32x128xbf16>, vector<8x128xf32> -> vector<8x128xf32>
    %18 = arith.addf %15, %17 : vector<8x128xf32>
    %19 = arith.negf %18 : vector<8x128xf32>
    %20 = math.exp %19 : vector<8x128xf32>
    %cst_17 = arith.constant 1.000000e+00 : f32
    %21 = vector.broadcast %cst_17 : f32 to vector<8x128xf32>
    %22 = arith.addf %21, %20 : vector<8x128xf32>
    %23 = arith.divf %21, %22 : vector<8x128xf32>
    %24 = vector.extract_strided_slice %23 {offsets = [0, 0], sizes = [8, 32], strides = [1, 1]} : vector<8x128xf32> to vector<8x32xf32>
    %25 = vector.extract_strided_slice %23 {offsets = [0, 32], sizes = [8, 32], strides = [1, 1]} : vector<8x128xf32> to vector<8x32xf32>
    %26 = vector.extract_strided_slice %23 {offsets = [0, 64], sizes = [8, 32], strides = [1, 1]} : vector<8x128xf32> to vector<8x32xf32>
    %cst_18 = arith.constant 2.000000e+00 : f32
    %27 = vector.broadcast %cst_18 : f32 to vector<8x32xf32>
    %28 = arith.mulf %27, %26 : vector<8x32xf32>
    %cst_19 = arith.constant 1.000000e+00 : f32
    %29 = vector.broadcast %cst_19 : f32 to vector<8x32xf32>
    %30 = arith.subf %28, %29 : vector<8x32xf32>
    %31 = vector.extract_strided_slice %23 {offsets = [0, 96], sizes = [8, 32], strides = [1, 1]} : vector<8x128xf32> to vector<8x32xf32>
    %32 = arith.mulf %25, %13 : vector<8x32xf32>
    %33 = arith.mulf %24, %30 : vector<8x32xf32>
    %34 = arith.addf %32, %33 : vector<8x32xf32>
    %35 = math.tanh %34 : vector<8x32xf32>
    %36 = arith.mulf %31, %35 : vector<8x32xf32>
    %37 = tpu.concatenate %36, %12 in 1 : vector<8x32xf32>, vector<8x32xf32> -> vector<8x64xf32>
    %38 = arith.truncf %37 : vector<8x64xf32> to vector<8x64xbf16>
    %cst_20 = arith.constant dense<0.000000e+00> : vector<8x128xf32>
    %39 = tpu.matmul %38, %9, %cst_20 {dimension_numbers = #tpu.dot_dimension_numbers<[1], [0], [0], [1], [0, 0, 1, 1], [], []>} : vector<8x64xbf16>, vector<64x128xbf16>, vector<8x128xf32> -> vector<8x128xf32>
    %40 = vector.broadcast %10 : vector<1x128xf32> to vector<8x128xf32>
    %41 = arith.addf %39, %40 : vector<8x128xf32>
    %42 = arith.negf %41 : vector<8x128xf32>
    %43 = math.exp %42 : vector<8x128xf32>
    %cst_21 = arith.constant 1.000000e+00 : f32
    %44 = vector.broadcast %cst_21 : f32 to vector<8x128xf32>
    %45 = arith.addf %44, %43 : vector<8x128xf32>
    %46 = arith.divf %44, %45 : vector<8x128xf32>
    %47 = vector.extract_strided_slice %46 {offsets = [0, 0], sizes = [8, 32], strides = [1, 1]} : vector<8x128xf32> to vector<8x32xf32>
    %48 = vector.extract_strided_slice %46 {offsets = [0, 32], sizes = [8, 32], strides = [1, 1]} : vector<8x128xf32> to vector<8x32xf32>
    %49 = vector.extract_strided_slice %46 {offsets = [0, 64], sizes = [8, 32], strides = [1, 1]} : vector<8x128xf32> to vector<8x32xf32>
    %cst_22 = arith.constant 2.000000e+00 : f32
    %50 = vector.broadcast %cst_22 : f32 to vector<8x32xf32>
    %51 = arith.mulf %50, %49 : vector<8x32xf32>
    %cst_23 = arith.constant 1.000000e+00 : f32
    %52 = vector.broadcast %cst_23 : f32 to vector<8x32xf32>
    %53 = arith.subf %51, %52 : vector<8x32xf32>
    %54 = vector.extract_strided_slice %46 {offsets = [0, 96], sizes = [8, 32], strides = [1, 1]} : vector<8x128xf32> to vector<8x32xf32>
    %55 = arith.mulf %48, %14 : vector<8x32xf32>
    %56 = arith.mulf %47, %53 : vector<8x32xf32>
    %57 = arith.addf %55, %56 : vector<8x32xf32>
    %58 = math.tanh %57 : vector<8x32xf32>
    %59 = arith.mulf %54, %58 : vector<8x32xf32>
    %60 = vector.extract_strided_slice %7 {offsets = [8, 0], sizes = [8, 128], strides = [1, 1]} : vector<64x128xf32> to vector<8x128xf32>
    %61 = arith.truncf %36 : vector<8x32xf32> to vector<8x32xbf16>
    %cst_24 = arith.constant dense<0.000000e+00> : vector<8x128xf32>
    %62 = tpu.matmul %61, %8, %cst_24 {dimension_numbers = #tpu.dot_dimension_numbers<[1], [0], [0], [1], [0, 0, 1, 1], [], []>} : vector<8x32xbf16>, vector<32x128xbf16>, vector<8x128xf32> -> vector<8x128xf32>
    %63 = arith.addf %60, %62 : vector<8x128xf32>
    %64 = arith.negf %63 : vector<8x128xf32>
    %65 = math.exp %64 : vector<8x128xf32>
    %cst_25 = arith.constant 1.000000e+00 : f32
    %66 = vector.broadcast %cst_25 : f32 to vector<8x128xf32>
    %67 = arith.addf %66, %65 : vector<8x128xf32>
    %68 = arith.divf %66, %67 : vector<8x128xf32>
    %69 = vector.extract_strided_slice %68 {offsets = [0, 0], sizes = [8, 32], strides = [1, 1]} : vector<8x128xf32> to vector<8x32xf32>
    %70 = vector.extract_strided_slice %68 {offsets = [0, 32], sizes = [8, 32], strides = [1, 1]} : vector<8x128xf32> to vector<8x32xf32>
    %71 = vector.extract_strided_slice %68 {offsets = [0, 64], sizes = [8, 32], strides = [1, 1]} : vector<8x128xf32> to vector<8x32xf32>
    %cst_26 = arith.constant 2.000000e+00 : f32
    %72 = vector.broadcast %cst_26 : f32 to vector<8x32xf32>
    %73 = arith.mulf %72, %71 : vector<8x32xf32>
    %cst_27 = arith.constant 1.000000e+00 : f32
    %74 = vector.broadcast %cst_27 : f32 to vector<8x32xf32>
    %75 = arith.subf %73, %74 : vector<8x32xf32>
    %76 = vector.extract_strided_slice %68 {offsets = [0, 96], sizes = [8, 32], strides = [1, 1]} : vector<8x128xf32> to vector<8x32xf32>
    %77 = arith.mulf %70, %34 : vector<8x32xf32>
    %78 = arith.mulf %69, %75 : vector<8x32xf32>
    %79 = arith.addf %77, %78 : vector<8x32xf32>
    %80 = math.tanh %79 : vector<8x32xf32>
    %81 = arith.mulf %76, %80 : vector<8x32xf32>
    %82 = tpu.concatenate %81, %59 in 1 : vector<8x32xf32>, vector<8x32xf32> -> vector<8x64xf32>
    %83 = arith.truncf %82 : vector<8x64xf32> to vector<8x64xbf16>
    %cst_28 = arith.constant dense<0.000000e+00> : vector<8x128xf32>
    %84 = tpu.matmul %83, %9, %cst_28 {dimension_numbers = #tpu.dot_dimension_numbers<[1], [0], [0], [1], [0, 0, 1, 1], [], []>} : vector<8x64xbf16>, vector<64x128xbf16>, vector<8x128xf32> -> vector<8x128xf32>
    %85 = vector.broadcast %10 : vector<1x128xf32> to vector<8x128xf32>
    %86 = arith.addf %84, %85 : vector<8x128xf32>
    %87 = arith.negf %86 : vector<8x128xf32>
    %88 = math.exp %87 : vector<8x128xf32>
    %cst_29 = arith.constant 1.000000e+00 : f32
    %89 = vector.broadcast %cst_29 : f32 to vector<8x128xf32>
    %90 = arith.addf %89, %88 : vector<8x128xf32>
    %91 = arith.divf %89, %90 : vector<8x128xf32>
    %92 = vector.extract_strided_slice %91 {offsets = [0, 0], sizes = [8, 32], strides = [1, 1]} : vector<8x128xf32> to vector<8x32xf32>
    %93 = vector.extract_strided_slice %91 {offsets = [0, 32], sizes = [8, 32], strides = [1, 1]} : vector<8x128xf32> to vector<8x32xf32>
    %94 = vector.extract_strided_slice %91 {offsets = [0, 64], sizes = [8, 32], strides = [1, 1]} : vector<8x128xf32> to vector<8x32xf32>
    %cst_30 = arith.constant 2.000000e+00 : f32
    %95 = vector.broadcast %cst_30 : f32 to vector<8x32xf32>
    %96 = arith.mulf %95, %94 : vector<8x32xf32>
    %cst_31 = arith.constant 1.000000e+00 : f32
    %97 = vector.broadcast %cst_31 : f32 to vector<8x32xf32>
    %98 = arith.subf %96, %97 : vector<8x32xf32>
    %99 = vector.extract_strided_slice %91 {offsets = [0, 96], sizes = [8, 32], strides = [1, 1]} : vector<8x128xf32> to vector<8x32xf32>
    %100 = arith.mulf %93, %57 : vector<8x32xf32>
    %101 = arith.mulf %92, %98 : vector<8x32xf32>
    %102 = arith.addf %100, %101 : vector<8x32xf32>
    %103 = math.tanh %102 : vector<8x32xf32>
    %104 = arith.mulf %99, %103 : vector<8x32xf32>
    %105 = vector.extract_strided_slice %7 {offsets = [16, 0], sizes = [8, 128], strides = [1, 1]} : vector<64x128xf32> to vector<8x128xf32>
    %106 = arith.truncf %81 : vector<8x32xf32> to vector<8x32xbf16>
    %cst_32 = arith.constant dense<0.000000e+00> : vector<8x128xf32>
    %107 = tpu.matmul %106, %8, %cst_32 {dimension_numbers = #tpu.dot_dimension_numbers<[1], [0], [0], [1], [0, 0, 1, 1], [], []>} : vector<8x32xbf16>, vector<32x128xbf16>, vector<8x128xf32> -> vector<8x128xf32>
    %108 = arith.addf %105, %107 : vector<8x128xf32>
    %109 = arith.negf %108 : vector<8x128xf32>
    %110 = math.exp %109 : vector<8x128xf32>
    %cst_33 = arith.constant 1.000000e+00 : f32
    %111 = vector.broadcast %cst_33 : f32 to vector<8x128xf32>
    %112 = arith.addf %111, %110 : vector<8x128xf32>
    %113 = arith.divf %111, %112 : vector<8x128xf32>
    %114 = vector.extract_strided_slice %113 {offsets = [0, 0], sizes = [8, 32], strides = [1, 1]} : vector<8x128xf32> to vector<8x32xf32>
    %115 = vector.extract_strided_slice %113 {offsets = [0, 32], sizes = [8, 32], strides = [1, 1]} : vector<8x128xf32> to vector<8x32xf32>
    %116 = vector.extract_strided_slice %113 {offsets = [0, 64], sizes = [8, 32], strides = [1, 1]} : vector<8x128xf32> to vector<8x32xf32>
    %cst_34 = arith.constant 2.000000e+00 : f32
    %117 = vector.broadcast %cst_34 : f32 to vector<8x32xf32>
    %118 = arith.mulf %117, %116 : vector<8x32xf32>
    %cst_35 = arith.constant 1.000000e+00 : f32
    %119 = vector.broadcast %cst_35 : f32 to vector<8x32xf32>
    %120 = arith.subf %118, %119 : vector<8x32xf32>
    %121 = vector.extract_strided_slice %113 {offsets = [0, 96], sizes = [8, 32], strides = [1, 1]} : vector<8x128xf32> to vector<8x32xf32>
    %122 = arith.mulf %115, %79 : vector<8x32xf32>
    %123 = arith.mulf %114, %120 : vector<8x32xf32>
    %124 = arith.addf %122, %123 : vector<8x32xf32>
    %125 = math.tanh %124 : vector<8x32xf32>
    %126 = arith.mulf %121, %125 : vector<8x32xf32>
    %127 = tpu.concatenate %126, %104 in 1 : vector<8x32xf32>, vector<8x32xf32> -> vector<8x64xf32>
    %128 = arith.truncf %127 : vector<8x64xf32> to vector<8x64xbf16>
    %cst_36 = arith.constant dense<0.000000e+00> : vector<8x128xf32>
    %129 = tpu.matmul %128, %9, %cst_36 {dimension_numbers = #tpu.dot_dimension_numbers<[1], [0], [0], [1], [0, 0, 1, 1], [], []>} : vector<8x64xbf16>, vector<64x128xbf16>, vector<8x128xf32> -> vector<8x128xf32>
    %130 = vector.broadcast %10 : vector<1x128xf32> to vector<8x128xf32>
    %131 = arith.addf %129, %130 : vector<8x128xf32>
    %132 = arith.negf %131 : vector<8x128xf32>
    %133 = math.exp %132 : vector<8x128xf32>
    %cst_37 = arith.constant 1.000000e+00 : f32
    %134 = vector.broadcast %cst_37 : f32 to vector<8x128xf32>
    %135 = arith.addf %134, %133 : vector<8x128xf32>
    %136 = arith.divf %134, %135 : vector<8x128xf32>
    %137 = vector.extract_strided_slice %136 {offsets = [0, 0], sizes = [8, 32], strides = [1, 1]} : vector<8x128xf32> to vector<8x32xf32>
    %138 = vector.extract_strided_slice %136 {offsets = [0, 32], sizes = [8, 32], strides = [1, 1]} : vector<8x128xf32> to vector<8x32xf32>
    %139 = vector.extract_strided_slice %136 {offsets = [0, 64], sizes = [8, 32], strides = [1, 1]} : vector<8x128xf32> to vector<8x32xf32>
    %cst_38 = arith.constant 2.000000e+00 : f32
    %140 = vector.broadcast %cst_38 : f32 to vector<8x32xf32>
    %141 = arith.mulf %140, %139 : vector<8x32xf32>
    %cst_39 = arith.constant 1.000000e+00 : f32
    %142 = vector.broadcast %cst_39 : f32 to vector<8x32xf32>
    %143 = arith.subf %141, %142 : vector<8x32xf32>
    %144 = vector.extract_strided_slice %136 {offsets = [0, 96], sizes = [8, 32], strides = [1, 1]} : vector<8x128xf32> to vector<8x32xf32>
    %145 = arith.mulf %138, %102 : vector<8x32xf32>
    %146 = arith.mulf %137, %143 : vector<8x32xf32>
    %147 = arith.addf %145, %146 : vector<8x32xf32>
    %148 = math.tanh %147 : vector<8x32xf32>
    %149 = arith.mulf %144, %148 : vector<8x32xf32>
    %150 = vector.extract_strided_slice %7 {offsets = [24, 0], sizes = [8, 128], strides = [1, 1]} : vector<64x128xf32> to vector<8x128xf32>
    %151 = arith.truncf %126 : vector<8x32xf32> to vector<8x32xbf16>
    %cst_40 = arith.constant dense<0.000000e+00> : vector<8x128xf32>
    %152 = tpu.matmul %151, %8, %cst_40 {dimension_numbers = #tpu.dot_dimension_numbers<[1], [0], [0], [1], [0, 0, 1, 1], [], []>} : vector<8x32xbf16>, vector<32x128xbf16>, vector<8x128xf32> -> vector<8x128xf32>
    %153 = arith.addf %150, %152 : vector<8x128xf32>
    %154 = arith.negf %153 : vector<8x128xf32>
    %155 = math.exp %154 : vector<8x128xf32>
    %cst_41 = arith.constant 1.000000e+00 : f32
    %156 = vector.broadcast %cst_41 : f32 to vector<8x128xf32>
    %157 = arith.addf %156, %155 : vector<8x128xf32>
    %158 = arith.divf %156, %157 : vector<8x128xf32>
    %159 = vector.extract_strided_slice %158 {offsets = [0, 0], sizes = [8, 32], strides = [1, 1]} : vector<8x128xf32> to vector<8x32xf32>
    %160 = vector.extract_strided_slice %158 {offsets = [0, 32], sizes = [8, 32], strides = [1, 1]} : vector<8x128xf32> to vector<8x32xf32>
    %161 = vector.extract_strided_slice %158 {offsets = [0, 64], sizes = [8, 32], strides = [1, 1]} : vector<8x128xf32> to vector<8x32xf32>
    %cst_42 = arith.constant 2.000000e+00 : f32
    %162 = vector.broadcast %cst_42 : f32 to vector<8x32xf32>
    %163 = arith.mulf %162, %161 : vector<8x32xf32>
    %cst_43 = arith.constant 1.000000e+00 : f32
    %164 = vector.broadcast %cst_43 : f32 to vector<8x32xf32>
    %165 = arith.subf %163, %164 : vector<8x32xf32>
    %166 = vector.extract_strided_slice %158 {offsets = [0, 96], sizes = [8, 32], strides = [1, 1]} : vector<8x128xf32> to vector<8x32xf32>
    %167 = arith.mulf %160, %124 : vector<8x32xf32>
    %168 = arith.mulf %159, %165 : vector<8x32xf32>
    %169 = arith.addf %167, %168 : vector<8x32xf32>
    %170 = math.tanh %169 : vector<8x32xf32>
    %171 = arith.mulf %166, %170 : vector<8x32xf32>
    %172 = tpu.concatenate %171, %149 in 1 : vector<8x32xf32>, vector<8x32xf32> -> vector<8x64xf32>
    %173 = arith.truncf %172 : vector<8x64xf32> to vector<8x64xbf16>
    %cst_44 = arith.constant dense<0.000000e+00> : vector<8x128xf32>
    %174 = tpu.matmul %173, %9, %cst_44 {dimension_numbers = #tpu.dot_dimension_numbers<[1], [0], [0], [1], [0, 0, 1, 1], [], []>} : vector<8x64xbf16>, vector<64x128xbf16>, vector<8x128xf32> -> vector<8x128xf32>
    %175 = vector.broadcast %10 : vector<1x128xf32> to vector<8x128xf32>
    %176 = arith.addf %174, %175 : vector<8x128xf32>
    %177 = arith.negf %176 : vector<8x128xf32>
    %178 = math.exp %177 : vector<8x128xf32>
    %cst_45 = arith.constant 1.000000e+00 : f32
    %179 = vector.broadcast %cst_45 : f32 to vector<8x128xf32>
    %180 = arith.addf %179, %178 : vector<8x128xf32>
    %181 = arith.divf %179, %180 : vector<8x128xf32>
    %182 = vector.extract_strided_slice %181 {offsets = [0, 0], sizes = [8, 32], strides = [1, 1]} : vector<8x128xf32> to vector<8x32xf32>
    %183 = vector.extract_strided_slice %181 {offsets = [0, 32], sizes = [8, 32], strides = [1, 1]} : vector<8x128xf32> to vector<8x32xf32>
    %184 = vector.extract_strided_slice %181 {offsets = [0, 64], sizes = [8, 32], strides = [1, 1]} : vector<8x128xf32> to vector<8x32xf32>
    %cst_46 = arith.constant 2.000000e+00 : f32
    %185 = vector.broadcast %cst_46 : f32 to vector<8x32xf32>
    %186 = arith.mulf %185, %184 : vector<8x32xf32>
    %cst_47 = arith.constant 1.000000e+00 : f32
    %187 = vector.broadcast %cst_47 : f32 to vector<8x32xf32>
    %188 = arith.subf %186, %187 : vector<8x32xf32>
    %189 = vector.extract_strided_slice %181 {offsets = [0, 96], sizes = [8, 32], strides = [1, 1]} : vector<8x128xf32> to vector<8x32xf32>
    %190 = arith.mulf %183, %147 : vector<8x32xf32>
    %191 = arith.mulf %182, %188 : vector<8x32xf32>
    %192 = arith.addf %190, %191 : vector<8x32xf32>
    %193 = math.tanh %192 : vector<8x32xf32>
    %194 = arith.mulf %189, %193 : vector<8x32xf32>
    %195 = vector.extract_strided_slice %7 {offsets = [32, 0], sizes = [8, 128], strides = [1, 1]} : vector<64x128xf32> to vector<8x128xf32>
    %196 = arith.truncf %171 : vector<8x32xf32> to vector<8x32xbf16>
    %cst_48 = arith.constant dense<0.000000e+00> : vector<8x128xf32>
    %197 = tpu.matmul %196, %8, %cst_48 {dimension_numbers = #tpu.dot_dimension_numbers<[1], [0], [0], [1], [0, 0, 1, 1], [], []>} : vector<8x32xbf16>, vector<32x128xbf16>, vector<8x128xf32> -> vector<8x128xf32>
    %198 = arith.addf %195, %197 : vector<8x128xf32>
    %199 = arith.negf %198 : vector<8x128xf32>
    %200 = math.exp %199 : vector<8x128xf32>
    %cst_49 = arith.constant 1.000000e+00 : f32
    %201 = vector.broadcast %cst_49 : f32 to vector<8x128xf32>
    %202 = arith.addf %201, %200 : vector<8x128xf32>
    %203 = arith.divf %201, %202 : vector<8x128xf32>
    %204 = vector.extract_strided_slice %203 {offsets = [0, 0], sizes = [8, 32], strides = [1, 1]} : vector<8x128xf32> to vector<8x32xf32>
    %205 = vector.extract_strided_slice %203 {offsets = [0, 32], sizes = [8, 32], strides = [1, 1]} : vector<8x128xf32> to vector<8x32xf32>
    %206 = vector.extract_strided_slice %203 {offsets = [0, 64], sizes = [8, 32], strides = [1, 1]} : vector<8x128xf32> to vector<8x32xf32>
    %cst_50 = arith.constant 2.000000e+00 : f32
    %207 = vector.broadcast %cst_50 : f32 to vector<8x32xf32>
    %208 = arith.mulf %207, %206 : vector<8x32xf32>
    %cst_51 = arith.constant 1.000000e+00 : f32
    %209 = vector.broadcast %cst_51 : f32 to vector<8x32xf32>
    %210 = arith.subf %208, %209 : vector<8x32xf32>
    %211 = vector.extract_strided_slice %203 {offsets = [0, 96], sizes = [8, 32], strides = [1, 1]} : vector<8x128xf32> to vector<8x32xf32>
    %212 = arith.mulf %205, %169 : vector<8x32xf32>
    %213 = arith.mulf %204, %210 : vector<8x32xf32>
    %214 = arith.addf %212, %213 : vector<8x32xf32>
    %215 = math.tanh %214 : vector<8x32xf32>
    %216 = arith.mulf %211, %215 : vector<8x32xf32>
    %217 = tpu.concatenate %216, %194 in 1 : vector<8x32xf32>, vector<8x32xf32> -> vector<8x64xf32>
    %218 = arith.truncf %217 : vector<8x64xf32> to vector<8x64xbf16>
    %cst_52 = arith.constant dense<0.000000e+00> : vector<8x128xf32>
    %219 = tpu.matmul %218, %9, %cst_52 {dimension_numbers = #tpu.dot_dimension_numbers<[1], [0], [0], [1], [0, 0, 1, 1], [], []>} : vector<8x64xbf16>, vector<64x128xbf16>, vector<8x128xf32> -> vector<8x128xf32>
    %220 = vector.broadcast %10 : vector<1x128xf32> to vector<8x128xf32>
    %221 = arith.addf %219, %220 : vector<8x128xf32>
    %222 = arith.negf %221 : vector<8x128xf32>
    %223 = math.exp %222 : vector<8x128xf32>
    %cst_53 = arith.constant 1.000000e+00 : f32
    %224 = vector.broadcast %cst_53 : f32 to vector<8x128xf32>
    %225 = arith.addf %224, %223 : vector<8x128xf32>
    %226 = arith.divf %224, %225 : vector<8x128xf32>
    %227 = vector.extract_strided_slice %226 {offsets = [0, 0], sizes = [8, 32], strides = [1, 1]} : vector<8x128xf32> to vector<8x32xf32>
    %228 = vector.extract_strided_slice %226 {offsets = [0, 32], sizes = [8, 32], strides = [1, 1]} : vector<8x128xf32> to vector<8x32xf32>
    %229 = vector.extract_strided_slice %226 {offsets = [0, 64], sizes = [8, 32], strides = [1, 1]} : vector<8x128xf32> to vector<8x32xf32>
    %cst_54 = arith.constant 2.000000e+00 : f32
    %230 = vector.broadcast %cst_54 : f32 to vector<8x32xf32>
    %231 = arith.mulf %230, %229 : vector<8x32xf32>
    %cst_55 = arith.constant 1.000000e+00 : f32
    %232 = vector.broadcast %cst_55 : f32 to vector<8x32xf32>
    %233 = arith.subf %231, %232 : vector<8x32xf32>
    %234 = vector.extract_strided_slice %226 {offsets = [0, 96], sizes = [8, 32], strides = [1, 1]} : vector<8x128xf32> to vector<8x32xf32>
    %235 = arith.mulf %228, %192 : vector<8x32xf32>
    %236 = arith.mulf %227, %233 : vector<8x32xf32>
    %237 = arith.addf %235, %236 : vector<8x32xf32>
    %238 = math.tanh %237 : vector<8x32xf32>
    %239 = arith.mulf %234, %238 : vector<8x32xf32>
    %240 = vector.extract_strided_slice %7 {offsets = [40, 0], sizes = [8, 128], strides = [1, 1]} : vector<64x128xf32> to vector<8x128xf32>
    %241 = arith.truncf %216 : vector<8x32xf32> to vector<8x32xbf16>
    %cst_56 = arith.constant dense<0.000000e+00> : vector<8x128xf32>
    %242 = tpu.matmul %241, %8, %cst_56 {dimension_numbers = #tpu.dot_dimension_numbers<[1], [0], [0], [1], [0, 0, 1, 1], [], []>} : vector<8x32xbf16>, vector<32x128xbf16>, vector<8x128xf32> -> vector<8x128xf32>
    %243 = arith.addf %240, %242 : vector<8x128xf32>
    %244 = arith.negf %243 : vector<8x128xf32>
    %245 = math.exp %244 : vector<8x128xf32>
    %cst_57 = arith.constant 1.000000e+00 : f32
    %246 = vector.broadcast %cst_57 : f32 to vector<8x128xf32>
    %247 = arith.addf %246, %245 : vector<8x128xf32>
    %248 = arith.divf %246, %247 : vector<8x128xf32>
    %249 = vector.extract_strided_slice %248 {offsets = [0, 0], sizes = [8, 32], strides = [1, 1]} : vector<8x128xf32> to vector<8x32xf32>
    %250 = vector.extract_strided_slice %248 {offsets = [0, 32], sizes = [8, 32], strides = [1, 1]} : vector<8x128xf32> to vector<8x32xf32>
    %251 = vector.extract_strided_slice %248 {offsets = [0, 64], sizes = [8, 32], strides = [1, 1]} : vector<8x128xf32> to vector<8x32xf32>
    %cst_58 = arith.constant 2.000000e+00 : f32
    %252 = vector.broadcast %cst_58 : f32 to vector<8x32xf32>
    %253 = arith.mulf %252, %251 : vector<8x32xf32>
    %cst_59 = arith.constant 1.000000e+00 : f32
    %254 = vector.broadcast %cst_59 : f32 to vector<8x32xf32>
    %255 = arith.subf %253, %254 : vector<8x32xf32>
    %256 = vector.extract_strided_slice %248 {offsets = [0, 96], sizes = [8, 32], strides = [1, 1]} : vector<8x128xf32> to vector<8x32xf32>
    %257 = arith.mulf %250, %214 : vector<8x32xf32>
    %258 = arith.mulf %249, %255 : vector<8x32xf32>
    %259 = arith.addf %257, %258 : vector<8x32xf32>
    %260 = math.tanh %259 : vector<8x32xf32>
    %261 = arith.mulf %256, %260 : vector<8x32xf32>
    %262 = tpu.concatenate %261, %239 in 1 : vector<8x32xf32>, vector<8x32xf32> -> vector<8x64xf32>
    %263 = arith.truncf %262 : vector<8x64xf32> to vector<8x64xbf16>
    %cst_60 = arith.constant dense<0.000000e+00> : vector<8x128xf32>
    %264 = tpu.matmul %263, %9, %cst_60 {dimension_numbers = #tpu.dot_dimension_numbers<[1], [0], [0], [1], [0, 0, 1, 1], [], []>} : vector<8x64xbf16>, vector<64x128xbf16>, vector<8x128xf32> -> vector<8x128xf32>
    %265 = vector.broadcast %10 : vector<1x128xf32> to vector<8x128xf32>
    %266 = arith.addf %264, %265 : vector<8x128xf32>
    %267 = arith.negf %266 : vector<8x128xf32>
    %268 = math.exp %267 : vector<8x128xf32>
    %cst_61 = arith.constant 1.000000e+00 : f32
    %269 = vector.broadcast %cst_61 : f32 to vector<8x128xf32>
    %270 = arith.addf %269, %268 : vector<8x128xf32>
    %271 = arith.divf %269, %270 : vector<8x128xf32>
    %272 = vector.extract_strided_slice %271 {offsets = [0, 0], sizes = [8, 32], strides = [1, 1]} : vector<8x128xf32> to vector<8x32xf32>
    %273 = vector.extract_strided_slice %271 {offsets = [0, 32], sizes = [8, 32], strides = [1, 1]} : vector<8x128xf32> to vector<8x32xf32>
    %274 = vector.extract_strided_slice %271 {offsets = [0, 64], sizes = [8, 32], strides = [1, 1]} : vector<8x128xf32> to vector<8x32xf32>
    %cst_62 = arith.constant 2.000000e+00 : f32
    %275 = vector.broadcast %cst_62 : f32 to vector<8x32xf32>
    %276 = arith.mulf %275, %274 : vector<8x32xf32>
    %cst_63 = arith.constant 1.000000e+00 : f32
    %277 = vector.broadcast %cst_63 : f32 to vector<8x32xf32>
    %278 = arith.subf %276, %277 : vector<8x32xf32>
    %279 = vector.extract_strided_slice %271 {offsets = [0, 96], sizes = [8, 32], strides = [1, 1]} : vector<8x128xf32> to vector<8x32xf32>
    %280 = arith.mulf %273, %237 : vector<8x32xf32>
    %281 = arith.mulf %272, %278 : vector<8x32xf32>
    %282 = arith.addf %280, %281 : vector<8x32xf32>
    %283 = math.tanh %282 : vector<8x32xf32>
    %284 = arith.mulf %279, %283 : vector<8x32xf32>
    %285 = vector.extract_strided_slice %7 {offsets = [48, 0], sizes = [8, 128], strides = [1, 1]} : vector<64x128xf32> to vector<8x128xf32>
    %286 = arith.truncf %261 : vector<8x32xf32> to vector<8x32xbf16>
    %cst_64 = arith.constant dense<0.000000e+00> : vector<8x128xf32>
    %287 = tpu.matmul %286, %8, %cst_64 {dimension_numbers = #tpu.dot_dimension_numbers<[1], [0], [0], [1], [0, 0, 1, 1], [], []>} : vector<8x32xbf16>, vector<32x128xbf16>, vector<8x128xf32> -> vector<8x128xf32>
    %288 = arith.addf %285, %287 : vector<8x128xf32>
    %289 = arith.negf %288 : vector<8x128xf32>
    %290 = math.exp %289 : vector<8x128xf32>
    %cst_65 = arith.constant 1.000000e+00 : f32
    %291 = vector.broadcast %cst_65 : f32 to vector<8x128xf32>
    %292 = arith.addf %291, %290 : vector<8x128xf32>
    %293 = arith.divf %291, %292 : vector<8x128xf32>
    %294 = vector.extract_strided_slice %293 {offsets = [0, 0], sizes = [8, 32], strides = [1, 1]} : vector<8x128xf32> to vector<8x32xf32>
    %295 = vector.extract_strided_slice %293 {offsets = [0, 32], sizes = [8, 32], strides = [1, 1]} : vector<8x128xf32> to vector<8x32xf32>
    %296 = vector.extract_strided_slice %293 {offsets = [0, 64], sizes = [8, 32], strides = [1, 1]} : vector<8x128xf32> to vector<8x32xf32>
    %cst_66 = arith.constant 2.000000e+00 : f32
    %297 = vector.broadcast %cst_66 : f32 to vector<8x32xf32>
    %298 = arith.mulf %297, %296 : vector<8x32xf32>
    %cst_67 = arith.constant 1.000000e+00 : f32
    %299 = vector.broadcast %cst_67 : f32 to vector<8x32xf32>
    %300 = arith.subf %298, %299 : vector<8x32xf32>
    %301 = vector.extract_strided_slice %293 {offsets = [0, 96], sizes = [8, 32], strides = [1, 1]} : vector<8x128xf32> to vector<8x32xf32>
    %302 = arith.mulf %295, %259 : vector<8x32xf32>
    %303 = arith.mulf %294, %300 : vector<8x32xf32>
    %304 = arith.addf %302, %303 : vector<8x32xf32>
    %305 = math.tanh %304 : vector<8x32xf32>
    %306 = arith.mulf %301, %305 : vector<8x32xf32>
    %307 = tpu.concatenate %306, %284 in 1 : vector<8x32xf32>, vector<8x32xf32> -> vector<8x64xf32>
    %308 = arith.truncf %307 : vector<8x64xf32> to vector<8x64xbf16>
    %cst_68 = arith.constant dense<0.000000e+00> : vector<8x128xf32>
    %309 = tpu.matmul %308, %9, %cst_68 {dimension_numbers = #tpu.dot_dimension_numbers<[1], [0], [0], [1], [0, 0, 1, 1], [], []>} : vector<8x64xbf16>, vector<64x128xbf16>, vector<8x128xf32> -> vector<8x128xf32>
    %310 = vector.broadcast %10 : vector<1x128xf32> to vector<8x128xf32>
    %311 = arith.addf %309, %310 : vector<8x128xf32>
    %312 = arith.negf %311 : vector<8x128xf32>
    %313 = math.exp %312 : vector<8x128xf32>
    %cst_69 = arith.constant 1.000000e+00 : f32
    %314 = vector.broadcast %cst_69 : f32 to vector<8x128xf32>
    %315 = arith.addf %314, %313 : vector<8x128xf32>
    %316 = arith.divf %314, %315 : vector<8x128xf32>
    %317 = vector.extract_strided_slice %316 {offsets = [0, 0], sizes = [8, 32], strides = [1, 1]} : vector<8x128xf32> to vector<8x32xf32>
    %318 = vector.extract_strided_slice %316 {offsets = [0, 32], sizes = [8, 32], strides = [1, 1]} : vector<8x128xf32> to vector<8x32xf32>
    %319 = vector.extract_strided_slice %316 {offsets = [0, 64], sizes = [8, 32], strides = [1, 1]} : vector<8x128xf32> to vector<8x32xf32>
    %cst_70 = arith.constant 2.000000e+00 : f32
    %320 = vector.broadcast %cst_70 : f32 to vector<8x32xf32>
    %321 = arith.mulf %320, %319 : vector<8x32xf32>
    %cst_71 = arith.constant 1.000000e+00 : f32
    %322 = vector.broadcast %cst_71 : f32 to vector<8x32xf32>
    %323 = arith.subf %321, %322 : vector<8x32xf32>
    %324 = vector.extract_strided_slice %316 {offsets = [0, 96], sizes = [8, 32], strides = [1, 1]} : vector<8x128xf32> to vector<8x32xf32>
    %325 = arith.mulf %318, %282 : vector<8x32xf32>
    %326 = arith.mulf %317, %323 : vector<8x32xf32>
    %327 = arith.addf %325, %326 : vector<8x32xf32>
    %328 = math.tanh %327 : vector<8x32xf32>
    %329 = arith.mulf %324, %328 : vector<8x32xf32>
    %330 = vector.extract_strided_slice %7 {offsets = [56, 0], sizes = [8, 128], strides = [1, 1]} : vector<64x128xf32> to vector<8x128xf32>
    %331 = arith.truncf %306 : vector<8x32xf32> to vector<8x32xbf16>
    %cst_72 = arith.constant dense<0.000000e+00> : vector<8x128xf32>
    %332 = tpu.matmul %331, %8, %cst_72 {dimension_numbers = #tpu.dot_dimension_numbers<[1], [0], [0], [1], [0, 0, 1, 1], [], []>} : vector<8x32xbf16>, vector<32x128xbf16>, vector<8x128xf32> -> vector<8x128xf32>
    %333 = arith.addf %330, %332 : vector<8x128xf32>
    %334 = arith.negf %333 : vector<8x128xf32>
    %335 = math.exp %334 : vector<8x128xf32>
    %cst_73 = arith.constant 1.000000e+00 : f32
    %336 = vector.broadcast %cst_73 : f32 to vector<8x128xf32>
    %337 = arith.addf %336, %335 : vector<8x128xf32>
    %338 = arith.divf %336, %337 : vector<8x128xf32>
    %339 = vector.extract_strided_slice %338 {offsets = [0, 0], sizes = [8, 32], strides = [1, 1]} : vector<8x128xf32> to vector<8x32xf32>
    %340 = vector.extract_strided_slice %338 {offsets = [0, 32], sizes = [8, 32], strides = [1, 1]} : vector<8x128xf32> to vector<8x32xf32>
    %341 = vector.extract_strided_slice %338 {offsets = [0, 64], sizes = [8, 32], strides = [1, 1]} : vector<8x128xf32> to vector<8x32xf32>
    %cst_74 = arith.constant 2.000000e+00 : f32
    %342 = vector.broadcast %cst_74 : f32 to vector<8x32xf32>
    %343 = arith.mulf %342, %341 : vector<8x32xf32>
    %cst_75 = arith.constant 1.000000e+00 : f32
    %344 = vector.broadcast %cst_75 : f32 to vector<8x32xf32>
    %345 = arith.subf %343, %344 : vector<8x32xf32>
    %346 = vector.extract_strided_slice %338 {offsets = [0, 96], sizes = [8, 32], strides = [1, 1]} : vector<8x128xf32> to vector<8x32xf32>
    %347 = arith.mulf %340, %304 : vector<8x32xf32>
    %348 = arith.mulf %339, %345 : vector<8x32xf32>
    %349 = arith.addf %347, %348 : vector<8x32xf32>
    %350 = math.tanh %349 : vector<8x32xf32>
    %351 = arith.mulf %346, %350 : vector<8x32xf32>
    %352 = tpu.concatenate %351, %329 in 1 : vector<8x32xf32>, vector<8x32xf32> -> vector<8x64xf32>
    %353 = arith.truncf %352 : vector<8x64xf32> to vector<8x64xbf16>
    %cst_76 = arith.constant dense<0.000000e+00> : vector<8x128xf32>
    %354 = tpu.matmul %353, %9, %cst_76 {dimension_numbers = #tpu.dot_dimension_numbers<[1], [0], [0], [1], [0, 0, 1, 1], [], []>} : vector<8x64xbf16>, vector<64x128xbf16>, vector<8x128xf32> -> vector<8x128xf32>
    %355 = vector.broadcast %10 : vector<1x128xf32> to vector<8x128xf32>
    %356 = arith.addf %354, %355 : vector<8x128xf32>
    %357 = arith.negf %356 : vector<8x128xf32>
    %358 = math.exp %357 : vector<8x128xf32>
    %cst_77 = arith.constant 1.000000e+00 : f32
    %359 = vector.broadcast %cst_77 : f32 to vector<8x128xf32>
    %360 = arith.addf %359, %358 : vector<8x128xf32>
    %361 = arith.divf %359, %360 : vector<8x128xf32>
    %362 = vector.extract_strided_slice %361 {offsets = [0, 0], sizes = [8, 32], strides = [1, 1]} : vector<8x128xf32> to vector<8x32xf32>
    %363 = vector.extract_strided_slice %361 {offsets = [0, 32], sizes = [8, 32], strides = [1, 1]} : vector<8x128xf32> to vector<8x32xf32>
    %364 = vector.extract_strided_slice %361 {offsets = [0, 64], sizes = [8, 32], strides = [1, 1]} : vector<8x128xf32> to vector<8x32xf32>
    %cst_78 = arith.constant 2.000000e+00 : f32
    %365 = vector.broadcast %cst_78 : f32 to vector<8x32xf32>
    %366 = arith.mulf %365, %364 : vector<8x32xf32>
    %cst_79 = arith.constant 1.000000e+00 : f32
    %367 = vector.broadcast %cst_79 : f32 to vector<8x32xf32>
    %368 = arith.subf %366, %367 : vector<8x32xf32>
    %369 = vector.extract_strided_slice %361 {offsets = [0, 96], sizes = [8, 32], strides = [1, 1]} : vector<8x128xf32> to vector<8x32xf32>
    %370 = arith.mulf %363, %327 : vector<8x32xf32>
    %371 = arith.mulf %362, %368 : vector<8x32xf32>
    %372 = arith.addf %370, %371 : vector<8x32xf32>
    %373 = math.tanh %372 : vector<8x32xf32>
    %374 = arith.mulf %369, %373 : vector<8x32xf32>
    %cst_80 = arith.constant 0.000000e+00 : f32
    %375 = vector.broadcast %cst_80 : f32 to vector<8x32xf32>
    %376 = arith.maximumf %374, %375 : vector<8x32xf32>
    %377 = arith.truncf %376 : vector<8x32xf32> to vector<8x32xbf16>
    %c0_81 = arith.constant 0 : index
    %c0_82 = arith.constant 0 : index
    %378 = vector.load %arg7[%c0_81, %c0_82] : memref<32x16xbf16, #tpu.memory_space<vmem>>, vector<32x16xbf16>
    %cst_83 = arith.constant dense<0.000000e+00> : vector<8x16xf32>
    %379 = tpu.matmul %377, %378, %cst_83 {dimension_numbers = #tpu.dot_dimension_numbers<[1], [0], [0], [1], [0, 0, 1, 1], [], []>} : vector<8x32xbf16>, vector<32x16xbf16>, vector<8x16xf32> -> vector<8x16xf32>
    %c0_84 = arith.constant 0 : index
    %c0_85 = arith.constant 0 : index
    %380 = vector.load %arg8[%c0_84, %c0_85] : memref<1x16xf32, #tpu.memory_space<vmem>>, vector<1x16xf32>
    %381 = vector.broadcast %380 : vector<1x16xf32> to vector<8x16xf32>
    %382 = arith.addf %379, %381 : vector<8x16xf32>
    %c0_86 = arith.constant 0 : index
    %c0_87 = arith.constant 0 : index
    %383 = vector.load %arg9[%c0_86, %c0_87] : memref<8x16xf32, #tpu.memory_space<vmem>>, vector<8x16xf32>
    tpu.vector_store %arg9[%c0_86, %c0_87], %382 {strides = array<i32>} : memref<8x16xf32, #tpu.memory_space<vmem>>, vector<8x16xf32>,
    return
  }
  func.func @transform_0(%arg0: i32) -> (i32, i32, i32) {
    %c0_i32 = arith.constant 0 : i32
    %c0_i32_0 = arith.constant 0 : i32
    %c0_i32_1 = arith.constant 0 : i32
    return %c0_i32, %arg0, %c0_i32_0 : i32, i32, i32
  }
  func.func @transform_1(%arg0: i32) -> (i32, i32) {
    %c0_i32 = arith.constant 0 : i32
    %c0_i32_0 = arith.constant 0 : i32
    %c0_i32_1 = arith.constant 0 : i32
    return %c0_i32, %c0_i32_0 : i32, i32
  }
  func.func @transform_2(%arg0: i32) -> (i32, i32) {
    %c0_i32 = arith.constant 0 : i32
    %c0_i32_0 = arith.constant 0 : i32
    %c0_i32_1 = arith.constant 0 : i32
    return %c0_i32, %c0_i32_0 : i32, i32
  }
  func.func @transform_3(%arg0: i32) -> (i32, i32) {
    %c0_i32 = arith.constant 0 : i32
    %c0_i32_0 = arith.constant 0 : i32
    %c0_i32_1 = arith.constant 0 : i32
    return %c0_i32, %c0_i32_0 : i32, i32
  }
  func.func @transform_4(%arg0: i32) -> (i32, i32) {
    %c0_i32 = arith.constant 0 : i32
    %c0_i32_0 = arith.constant 0 : i32
    %c0_i32_1 = arith.constant 0 : i32
    return %c0_i32, %c0_i32_0 : i32, i32
  }
  func.func @transform_5(%arg0: i32) -> (i32, i32) {
    %c0_i32 = arith.constant 0 : i32
    %c0_i32_0 = arith.constant 0 : i32
    %c0_i32_1 = arith.constant 0 : i32
    return %c0_i32, %c0_i32_0 : i32, i32
  }
  func.func @transform_6(%arg0: i32) -> (i32, i32) {
    %c0_i32 = arith.constant 0 : i32
    %c0_i32_0 = arith.constant 0 : i32
    %c0_i32_1 = arith.constant 0 : i32
    return %c0_i32, %c0_i32_0 : i32, i32
  }
  func.func @transform_7(%arg0: i32) -> (i32, i32) {
    %c0_i32 = arith.constant 0 : i32
    %c0_i32_0 = arith.constant 0 : i32
    %c0_i32_1 = arith.constant 0 : i32
    return %c0_i32, %c0_i32_0 : i32, i32
  }
  func.func @transform_8(%arg0: i32) -> (i32, i32) {
    %c0_i32 = arith.constant 0 : i32
    %c0_i32_0 = arith.constant 0 : i32
    return %arg0, %c0_i32 : i32, i32
  }
}

</mosaic_0001>

<llo_original>
// kernel: decoder_forward.1
$region0: #{decoder_forward.1}
  #allocation0 [shape = 'u32[]', space=smem, size = 0x4, offset = 0x4, fixed_abs, tag = 'smem constant byte address 0x4 - core index']
  #allocation1 [shape = 'u32[144,128]{1,0:T(1,128)}', space=vmem, size = 0x12000, scoped, tag = 'internal scratch']
  %s0 = inlined_call_operand.vmem [shape: f32[8,8,32], index: 0, kind: input, shape index: {}]
  %s1 = inlined_call_operand.vmem [shape: bf16[32,128], index: 1, kind: input, shape index: {}]
  %s2 = inlined_call_operand.vmem [shape: bf16[32,128], index: 2, kind: input, shape index: {}]
  %s3 = inlined_call_operand.vmem [shape: f32[1,128], index: 3, kind: input, shape index: {}]
  %s4 = inlined_call_operand.vmem [shape: bf16[64,128], index: 4, kind: input, shape index: {}]
  %s5 = inlined_call_operand.vmem [shape: f32[1,128], index: 5, kind: input, shape index: {}]
  %s6 = inlined_call_operand.vmem [shape: bf16[32,16], index: 6, kind: input, shape index: {}]
  %s7 = inlined_call_operand.vmem [shape: f32[1,16], index: 7, kind: input, shape index: {}]
  %s8 = inlined_call_operand.vmem [shape: f32[8,16], index: 8, kind: output, shape index: {}]
  %s9 = sld [smem:[#allocation0]]
  $region42: #{decoder_forward.1} parent=0
    _
  %s11 = ssub.s32 1, %s9
  %s12 = scalar_select 0, %s11, %s9
  // Predicated region
  $region2: #{decoder_forward.1} parent=0 // pred_check
    _
  $region3: #{decoder_forward.1} parent=0 // pred_check_branch
    %14 = sbr.rel (0) target = $region5
  $region4: #{decoder_forward.1} parent=0 // pred_region
    _
  $region5: #{decoder_forward.1} parent=0 // pred_fallthru
    _
  // Predicated region
  $region6: #{decoder_forward.1} parent=0 // pred_check
    _
  $region7: #{decoder_forward.1} parent=0 // pred_check_branch
    %16 = sbr.rel (0) target = $region9
  $region8: #{decoder_forward.1} parent=0 // pred_region
    _
  $region9: #{decoder_forward.1} parent=0 // pred_fallthru
    _
  // Predicated region
  $region10: #{decoder_forward.1} parent=0 // pred_check
    _
  $region11: #{decoder_forward.1} parent=0 // pred_check_branch
    %18 = sbr.rel (0) target = $region13
  $region12: #{decoder_forward.1} parent=0 // pred_region
    _
  $region13: #{decoder_forward.1} parent=0 // pred_fallthru
    _
  // Predicated region
  $region14: #{decoder_forward.1} parent=0 // pred_check
    _
  $region15: #{decoder_forward.1} parent=0 // pred_check_branch
    %20 = sbr.rel (0) target = $region17
  $region16: #{decoder_forward.1} parent=0 // pred_region
    _
  $region17: #{decoder_forward.1} parent=0 // pred_fallthru
    _
  // Predicated region
  $region18: #{decoder_forward.1} parent=0 // pred_check
    _
  $region19: #{decoder_forward.1} parent=0 // pred_check_branch
    %22 = sbr.rel (0) target = $region21
  $region20: #{decoder_forward.1} parent=0 // pred_region
    _
  $region21: #{decoder_forward.1} parent=0 // pred_fallthru
    _
  // Predicated region
  $region22: #{decoder_forward.1} parent=0 // pred_check
    _
  $region23: #{decoder_forward.1} parent=0 // pred_check_branch
    %24 = sbr.rel (0) target = $region25
  $region24: #{decoder_forward.1} parent=0 // pred_region
    _
  $region25: #{decoder_forward.1} parent=0 // pred_fallthru
    _
  // Predicated region
  $region26: #{decoder_forward.1} parent=0 // pred_check
    _
  $region27: #{decoder_forward.1} parent=0 // pred_check_branch
    %26 = sbr.rel (0) target = $region29
  $region28: #{decoder_forward.1} parent=0 // pred_region
    _
  $region29: #{decoder_forward.1} parent=0 // pred_fallthru
    _
  // Predicated region
  $region30: #{decoder_forward.1} parent=0 // pred_check
    _
  $region31: #{decoder_forward.1} parent=0 // pred_check_branch
    %28 = sbr.rel (0) target = $region33
  $region32: #{decoder_forward.1} parent=0 // pred_region
    _
  $region33: #{decoder_forward.1} parent=0 // pred_fallthru
    _
  %v30 = vld [vmem:[%s0] sm:$0xff]
  %v31 = vld [vmem:[%s0 + $0x8] sm:$0xff]
  %v32 = vld [vmem:[%s0 + $0x10] sm:$0xff]
  %v33 = vld [vmem:[%s0 + $0x18] sm:$0xff]
  %v34 = vld [vmem:[%s0 + $0x20] sm:$0xff]
  %v35 = vld [vmem:[%s0 + $0x28] sm:$0xff]
  %v36 = vld [vmem:[%s0 + $0x30] sm:$0xff]
  %v37 = vld [vmem:[%s0 + $0x38] sm:$0xff]
  %v38 = vpack.c.bf16 %v31, %v30
  %v39 = vpack.c.bf16 %v33, %v32
  %v40 = vpack.c.bf16 %v35, %v34
  %v41 = vpack.c.bf16 %v37, %v36
  %v42 = vld [vmem:[%s1] sm:$0xf]
  %v43 = vld [vmem:[%s1 + $0x4] sm:$0xf]
  %v44 = vld [vmem:[%s1 + $0x8] sm:$0xf]
  %v45 = vld [vmem:[%s1 + $0xc] sm:$0xf]
  %v46 = vld [vmem:[%s3] sm:$0x1]
  %v48 = vlaneseq
  %v49 = vshrl.u32 %v48, 7
  %v50 = vsub.s32 0, %v49
  %v51 = vrot.slane %v46, %v50
  %v57 = vunpack.c.l.b16 %v42
  %v58 = vunpack.c.l.b16 %v43
  %v59 = vunpack.c.l.b16 %v44
  %v60 = vunpack.c.l.b16 %v45
  %v61 = vpack.c.b16 %v58, %v57
  %v62 = vpack.c.b16 %v60, %v59
  %vm65 = vcmask 261120
  %v67 = vsel %vm65, %v38, 0
  %v70 = vsel %vm65, %v39, 0
  %v73 = vsel %vm65, %v40, 0
  %v76 = vsel %vm65, %v41, 0
  %78 = vmatprep.subr.bf16.mxu0 0
  %79 = vmatpush1.bf16.msra.mxu0 %v61
  %80 = vmatprep.subr.bf16.mxu0 0
  %81 = vmatpush1.bf16.msra.mxu0 %v62
  %82 = vmatprep.subr.bf16.mxu0 0
  %83 = vmatpush1.bf16.msra.mxu0 0
  %84 = vmatprep.subr.bf16.mxu0 0
  %85 = vmatpush1.bf16.msra.mxu0 0
  %86 = vmatprep.subr.bf16.mxu0 0
  %87 = vmatpush1.bf16.msra.mxu0 0
  %88 = vmatprep.subr.bf16.mxu0 0
  %89 = vmatpush1.bf16.msra.mxu0 0
  %90 = vmatprep.subr.bf16.mxu0 0
  %91 = vmatpush1.bf16.msra.mxu0 0
  %92 = vmatprep.subr.bf16.mxu0 0
  %93 = vmatpush1.bf16.msra.mxu0 0
  %94 = vmatprep.subr.bf16.mxu0 0
  %95 = vmatpush1.bf16.msra.mxu0 0
  %96 = vmatprep.subr.bf16.mxu0 0
  %97 = vmatpush1.bf16.msra.mxu0 0
  %98 = vmatprep.subr.bf16.mxu0 0
  %99 = vmatpush1.bf16.msra.mxu0 0
  %100 = vmatprep.subr.bf16.mxu0 0
  %101 = vmatpush1.bf16.msra.mxu0 0
  %102 = vmatprep.subr.bf16.mxu0 0
  %103 = vmatpush1.bf16.msra.mxu0 0
  %104 = vmatprep.subr.bf16.mxu0 0
  %105 = vmatpush1.bf16.msra.mxu0 0
  %106 = vmatprep.subr.bf16.mxu0 0
  %107 = vmatpush1.bf16.msra.mxu0 0
  %108 = vmatprep.subr.bf16.mxu0 0
  %109 = vmatpush1.bf16.msra.mxu0 0
  %110 = vmatprep.mubr.bf16.mxu0 0
  %111 = vmatmul.mubr.bf16.gmra.mrb[0].mxu0 %v67
  %v112 = vpop.f32.mrb[0].mxu0
  %v113 = vadd.f32 %v51, %v112
  %v114 = vpop.f32.mrb[0].mxu0
  %v115 = vpop.f32.mrb[0].mxu0
  %v116 = vadd.f32 %v51, %v115
  %v117 = vpop.f32.mrb[0].mxu0
  %118 = vmatprep.mubr.bf16.mxu0 0
  %119 = vmatmul.mubr.bf16.gmra.mrb[0].mxu0 %v70
  %v120 = vpop.f32.mrb[0].mxu0
  %v121 = vadd.f32 %v51, %v120
  %v122 = vpop.f32.mrb[0].mxu0
  %v123 = vpop.f32.mrb[0].mxu0
  %v124 = vadd.f32 %v51, %v123
  %v125 = vpop.f32.mrb[0].mxu0
  %126 = vmatprep.mubr.bf16.mxu0 0
  %127 = vmatmul.mubr.bf16.gmra.mrb[0].mxu0 %v73
  %v128 = vpop.f32.mrb[0].mxu0
  %v129 = vadd.f32 %v51, %v128
  %v130 = vpop.f32.mrb[0].mxu0
  %v131 = vpop.f32.mrb[0].mxu0
  %v132 = vadd.f32 %v51, %v131
  %v133 = vpop.f32.mrb[0].mxu0
  %134 = vmatprep.mubr.bf16.mxu0 0
  %135 = vmatmul.mubr.bf16.gmra.mrb[0].mxu0 %v76
  %v136 = vpop.f32.mrb[0].mxu0
  %v137 = vadd.f32 %v51, %v136
  %v138 = vpop.f32.mrb[0].mxu0
  %v139 = vpop.f32.mrb[0].mxu0
  %v140 = vadd.f32 %v51, %v139
  %v141 = vpop.f32.mrb[0].mxu0
  %142 = vdwg.mxu0
  %v143 = vld [vmem:[%s2] sm:$0xf]
  %v144 = vld [vmem:[%s2 + $0x4] sm:$0xf]
  %v145 = vld [vmem:[%s2 + $0x8] sm:$0xf]
  %v146 = vld [vmem:[%s2 + $0xc] sm:$0xf]
  %v147 = vld [vmem:[%s4] sm:$0xf]
  %v148 = vld [vmem:[%s4 + $0x4] sm:$0xf]
  %v149 = vld [vmem:[%s4 + $0x8] sm:$0xf]
  %v150 = vld [vmem:[%s4 + $0xc] sm:$0xf]
  %v151 = vld [vmem:[%s4 + $0x10] sm:$0xf]
  %v152 = vld [vmem:[%s4 + $0x14] sm:$0xf]
  %v153 = vld [vmem:[%s4 + $0x18] sm:$0xf]
  %v154 = vld [vmem:[%s4 + $0x1c] sm:$0xf]
  %v155 = vld [vmem:[%s5] sm:$0x1]
  %v160 = vunpack.c.l.b16 %v143
  %v161 = vunpack.c.l.b16 %v144
  %v162 = vunpack.c.l.b16 %v145
  %v163 = vunpack.c.l.b16 %v146
  %v164 = vpack.c.b16 %v161, %v160
  %v165 = vpack.c.b16 %v163, %v162
  %v169 = vsel %vm65, 0, 0
  %171 = vmatprep.subr.bf16.mxu0 0
  %172 = vmatpush1.bf16.msra.mxu0 %v164
  %173 = vmatprep.subr.bf16.mxu0 0
  %174 = vmatpush1.bf16.msra.mxu0 %v165
  %175 = vmatprep.subr.bf16.mxu0 0
  %176 = vmatpush1.bf16.msra.mxu0 0
  %177 = vmatprep.subr.bf16.mxu0 0
  %178 = vmatpush1.bf16.msra.mxu0 0
  %179 = vmatprep.subr.bf16.mxu0 0
  %180 = vmatpush1.bf16.msra.mxu0 0
  %181 = vmatprep.subr.bf16.mxu0 0
  %182 = vmatpush1.bf16.msra.mxu0 0
  %183 = vmatprep.subr.bf16.mxu0 0
  %184 = vmatpush1.bf16.msra.mxu0 0
  %185 = vmatprep.subr.bf16.mxu0 0
  %186 = vmatpush1.bf16.msra.mxu0 0
  %187 = vmatprep.subr.bf16.mxu0 0
  %188 = vmatpush1.bf16.msra.mxu0 0
  %189 = vmatprep.subr.bf16.mxu0 0
  %190 = vmatpush1.bf16.msra.mxu0 0
  %191 = vmatprep.subr.bf16.mxu0 0
  %192 = vmatpush1.bf16.msra.mxu0 0
  %193 = vmatprep.subr.bf16.mxu0 0
  %194 = vmatpush1.bf16.msra.mxu0 0
  %195 = vmatprep.subr.bf16.mxu0 0
  %196 = vmatpush1.bf16.msra.mxu0 0
  %197 = vmatprep.subr.bf16.mxu0 0
  %198 = vmatpush1.bf16.msra.mxu0 0
  %199 = vmatprep.subr.bf16.mxu0 0
  %200 = vmatpush1.bf16.msra.mxu0 0
  %201 = vmatprep.subr.bf16.mxu0 0
  %202 = vmatpush1.bf16.msra.mxu0 0
  %203 = vmatprep.mubr.bf16.mxu0 0
  %204 = vmatmul.mubr.bf16.gmra.mrb[0].mxu0 %v169
  %v205 = vpop.f32.mrb[0].mxu0
  %v206 = vadd.f32 0.0, %v205
  %v207 = vpop.f32.mrb[0].mxu0
  %v208 = vpop.f32.mrb[0].mxu0
  %v209 = vpop.f32.mrb[0].mxu0
  %210 = vdwg.mxu0
  %v211 = vadd.f32 %v113, %v206
  %v212 = vxor.u32 %v211, 2147483648
  %v213 = vmul.f32 %v212, 1.442695
  %v214 = vpow.pop %v213
  %v215 = vadd.f32 %v214, 1.0
  %v216 = vrcp.pop %v215
  %v217 = vmul.f32 1.0, %v216
  %v218 = vmul.f32 %v217, 2.0
  %v219 = vsub.f32 %v218, 1.0
  %v220 = vmul.f32 %v217, 0.0
  %222 = vrot.lane.b32.xlu0 %v219, 64
  %v223 = vpop.permute.xlu0 %222
  %v225 = vmul.f32 %v217, %v223
  %227 = vrot.lane.b32.xlu0 %v225, 32
  %v228 = vpop.permute.xlu0 %227
  %v230 = vadd.f32 %v220, %v228
  %v231 = vtanh.pop %v230
  %233 = vrot.lane.b32.xlu0 %v231, 64
  %v234 = vpop.permute.xlu0 %233
  %v236 = vmul.f32 %v217, %v234
  %238 = vrot.lane.b32.xlu0 %v236, 32
  %v239 = vpop.permute.xlu0 %238
  %v241 = vsel %vm65, %v239, 0.0
  %v242 = vpack.c.bf16 %v241, %v241
  %v244 = vlaneseq
  %v245 = vshrl.u32 %v244, 7
  %v246 = vsub.s32 0, %v245
  %v247 = vrot.slane %v155, %v246
  %v257 = vunpack.c.l.b16 %v147
  %v258 = vunpack.c.l.b16 %v148
  %v259 = vunpack.c.l.b16 %v149
  %v260 = vunpack.c.l.b16 %v150
  %v261 = vunpack.c.l.b16 %v151
  %v262 = vunpack.c.l.b16 %v152
  %v263 = vunpack.c.l.b16 %v153
  %v264 = vunpack.c.l.b16 %v154
  %v265 = vpack.c.b16 %v258, %v257
  %v266 = vpack.c.b16 %v260, %v259
  %v267 = vpack.c.b16 %v262, %v261
  %v268 = vpack.c.b16 %v264, %v263
  %vm273 = vcmask 523264
  %v275 = vsel %vm273, %v242, 0
  %277 = vmatprep.subr.bf16.mxu0 0
  %278 = vmatpush1.bf16.msra.mxu0 %v265
  %279 = vmatprep.subr.bf16.mxu0 0
  %280 = vmatpush1.bf16.msra.mxu0 %v266
  %281 = vmatprep.subr.bf16.mxu0 0
  %282 = vmatpush1.bf16.msra.mxu0 %v267
  %283 = vmatprep.subr.bf16.mxu0 0
  %284 = vmatpush1.bf16.msra.mxu0 %v268
  %285 = vmatprep.subr.bf16.mxu0 0
  %286 = vmatpush1.bf16.msra.mxu0 0
  %287 = vmatprep.subr.bf16.mxu0 0
  %288 = vmatpush1.bf16.msra.mxu0 0
  %289 = vmatprep.subr.bf16.mxu0 0
  %290 = vmatpush1.bf16.msra.mxu0 0
  %291 = vmatprep.subr.bf16.mxu0 0
  %292 = vmatpush1.bf16.msra.mxu0 0
  %293 = vmatprep.subr.bf16.mxu0 0
  %294 = vmatpush1.bf16.msra.mxu0 0
  %295 = vmatprep.subr.bf16.mxu0 0
  %296 = vmatpush1.bf16.msra.mxu0 0
  %297 = vmatprep.subr.bf16.mxu0 0
  %298 = vmatpush1.bf16.msra.mxu0 0
  %299 = vmatprep.subr.bf16.mxu0 0
  %300 = vmatpush1.bf16.msra.mxu0 0
  %301 = vmatprep.subr.bf16.mxu0 0
  %302 = vmatpush1.bf16.msra.mxu0 0
  %303 = vmatprep.subr.bf16.mxu0 0
  %304 = vmatpush1.bf16.msra.mxu0 0
  %305 = vmatprep.subr.bf16.mxu0 0
  %306 = vmatpush1.bf16.msra.mxu0 0
  %307 = vmatprep.subr.bf16.mxu0 0
  %308 = vmatpush1.bf16.msra.mxu0 0
  %309 = vmatprep.mubr.bf16.mxu0 0
  %310 = vmatmul.mubr.bf16.gmra.mrb[0].mxu0 %v275
  %v311 = vpop.f32.mrb[0].mxu0
  %v312 = vadd.f32 %v247, %v311
  %v313 = vpop.f32.mrb[0].mxu0
  %v314 = vpop.f32.mrb[0].mxu0
  %v315 = vpop.f32.mrb[0].mxu0
  %316 = vdwg.mxu0
  %v317 = vxor.u32 %v312, 2147483648
  %v318 = vmul.f32 %v317, 1.442695
  %v319 = vpow.pop %v318
  %v320 = vadd.f32 %v319, 1.0
  %v321 = vrcp.pop %v320
  %v322 = vmul.f32 1.0, %v321
  %v323 = vmul.f32 %v322, 2.0
  %v324 = vsub.f32 %v323, 1.0
  %v325 = vmul.f32 %v322, 0.0
  %327 = vrot.lane.b32.xlu0 %v324, 64
  %v328 = vpop.permute.xlu0 %327
  %v330 = vmul.f32 %v322, %v328
  %332 = vrot.lane.b32.xlu0 %v330, 32
  %v333 = vpop.permute.xlu0 %332
  %v335 = vadd.f32 %v325, %v333
  %v336 = vtanh.pop %v335
  %338 = vrot.lane.b32.xlu0 %v336, 64
  %v339 = vpop.permute.xlu0 %338
  %v341 = vmul.f32 %v322, %v339
  %v342 = vpack.c.bf16 %v236, %v236
  %344 = vrot.lane.b32.xlu0 %v342, 32
  %v345 = vpop.permute.xlu0 %344
  %v347 = vsel %vm65, %v345, 0
  %349 = vmatprep.subr.bf16.mxu0 0
  %350 = vmatpush1.bf16.msra.mxu0 %v164
  %351 = vmatprep.subr.bf16.mxu0 0
  %352 = vmatpush1.bf16.msra.mxu0 %v165
  %353 = vmatprep.subr.bf16.mxu0 0
  %354 = vmatpush1.bf16.msra.mxu0 0
  %355 = vmatprep.subr.bf16.mxu0 0
  %356 = vmatpush1.bf16.msra.mxu0 0
  %357 = vmatprep.subr.bf16.mxu0 0
  %358 = vmatpush1.bf16.msra.mxu0 0
  %359 = vmatprep.subr.bf16.mxu0 0
  %360 = vmatpush1.bf16.msra.mxu0 0
  %361 = vmatprep.subr.bf16.mxu0 0
  %362 = vmatpush1.bf16.msra.mxu0 0
  %363 = vmatprep.subr.bf16.mxu0 0
  %364 = vmatpush1.bf16.msra.mxu0 0
  %365 = vmatprep.subr.bf16.mxu0 0
  %366 = vmatpush1.bf16.msra.mxu0 0
  %367 = vmatprep.subr.bf16.mxu0 0
  %368 = vmatpush1.bf16.msra.mxu0 0
  %369 = vmatprep.subr.bf16.mxu0 0
  %370 = vmatpush1.bf16.msra.mxu0 0
  %371 = vmatprep.subr.bf16.mxu0 0
  %372 = vmatpush1.bf16.msra.mxu0 0
  %373 = vmatprep.subr.bf16.mxu0 0
  %374 = vmatpush1.bf16.msra.mxu0 0
  %375 = vmatprep.subr.bf16.mxu0 0
  %376 = vmatpush1.bf16.msra.mxu0 0
  %377 = vmatprep.subr.bf16.mxu0 0
  %378 = vmatpush1.bf16.msra.mxu0 0
  %379 = vmatprep.subr.bf16.mxu0 0
  %380 = vmatpush1.bf16.msra.mxu0 0
  %381 = vmatprep.mubr.bf16.mxu0 0
  %382 = vmatmul.mubr.bf16.gmra.mrb[0].mxu0 %v347
  %v383 = vpop.f32.mrb[0].mxu0
  %v384 = vadd.f32 0.0, %v383
  %v385 = vpop.f32.mrb[0].mxu0
  %v386 = vpop.f32.mrb[0].mxu0
  %v387 = vpop.f32.mrb[0].mxu0
  %388 = vdwg.mxu0
  %v389 = vadd.f32 %v116, %v384
  %v390 = vxor.u32 %v389, 2147483648
  %v391 = vmul.f32 %v390, 1.442695
  %v392 = vpow.pop %v391
  %v393 = vadd.f32 %v392, 1.0
  %v394 = vrcp.pop %v393
  %v395 = vmul.f32 1.0, %v394
  %v396 = vmul.f32 %v395, 2.0
  %v397 = vsub.f32 %v396, 1.0
  %v398 = vmul.f32 %v395, %v230
  %400 = vrot.lane.b32.xlu0 %v397, 64
  %v401 = vpop.permute.xlu0 %400
  %v403 = vmul.f32 %v395, %v401
  %405 = vrot.lane.b32.xlu0 %v403, 32
  %v406 = vpop.permute.xlu0 %405
  %v408 = vadd.f32 %v398, %v406
  %v409 = vtanh.pop %v408
  %411 = vrot.lane.b32.xlu0 %v409, 64
  %v412 = vpop.permute.xlu0 %411
  %v414 = vmul.f32 %v395, %v412
  %416 = vrot.lane.b32.xlu0 %v414, 32
  %v417 = vpop.permute.xlu0 %416
  %420 = vrot.lane.b32.xlu0 %v341, 64
  %v421 = vpop.permute.xlu0 %420
  %v423 = vsel %vm65, %v417, %v421
  %v424 = vpack.c.bf16 %v423, %v423
  %v426 = vsel %vm273, %v424, 0
  %428 = vmatprep.subr.bf16.mxu0 0
  %429 = vmatpush1.bf16.msra.mxu0 %v265
  %430 = vmatprep.subr.bf16.mxu0 0
  %431 = vmatpush1.bf16.msra.mxu0 %v266
  %432 = vmatprep.subr.bf16.mxu0 0
  %433 = vmatpush1.bf16.msra.mxu0 %v267
  %434 = vmatprep.subr.bf16.mxu0 0
  %435 = vmatpush1.bf16.msra.mxu0 %v268
  %436 = vmatprep.subr.bf16.mxu0 0
  %437 = vmatpush1.bf16.msra.mxu0 0
  %438 = vmatprep.subr.bf16.mxu0 0
  %439 = vmatpush1.bf16.msra.mxu0 0
  %440 = vmatprep.subr.bf16.mxu0 0
  %441 = vmatpush1.bf16.msra.mxu0 0
  %442 = vmatprep.subr.bf16.mxu0 0
  %443 = vmatpush1.bf16.msra.mxu0 0
  %444 = vmatprep.subr.bf16.mxu0 0
  %445 = vmatpush1.bf16.msra.mxu0 0
  %446 = vmatprep.subr.bf16.mxu0 0
  %447 = vmatpush1.bf16.msra.mxu0 0
  %448 = vmatprep.subr.bf16.mxu0 0
  %449 = vmatpush1.bf16.msra.mxu0 0
  %450 = vmatprep.subr.bf16.mxu0 0
  %451 = vmatpush1.bf16.msra.mxu0 0
  %452 = vmatprep.subr.bf16.mxu0 0
  %453 = vmatpush1.bf16.msra.mxu0 0
  %454 = vmatprep.subr.bf16.mxu0 0
  %455 = vmatpush1.bf16.msra.mxu0 0
  %456 = vmatprep.subr.bf16.mxu0 0
  %457 = vmatpush1.bf16.msra.mxu0 0
  %458 = vmatprep.subr.bf16.mxu0 0
  %459 = vmatpush1.bf16.msra.mxu0 0
  %460 = vmatprep.mubr.bf16.mxu0 0
  %461 = vmatmul.mubr.bf16.gmra.mrb[0].mxu0 %v426
  %v462 = vpop.f32.mrb[0].mxu0
  %v463 = vadd.f32 %v247, %v462
  %v464 = vpop.f32.mrb[0].mxu0
  %v465 = vpop.f32.mrb[0].mxu0
  %v466 = vpop.f32.mrb[0].mxu0
  %467 = vdwg.mxu0
  %v468 = vxor.u32 %v463, 2147483648
  %v469 = vmul.f32 %v468, 1.442695
  %v470 = vpow.pop %v469
  %v471 = vadd.f32 %v470, 1.0
  %v472 = vrcp.pop %v471
  %v473 = vmul.f32 1.0, %v472
  %v474 = vmul.f32 %v473, 2.0
  %v475 = vsub.f32 %v474, 1.0
  %v476 = vmul.f32 %v473, %v335
  %478 = vrot.lane.b32.xlu0 %v475, 64
  %v479 = vpop.permute.xlu0 %478
  %v481 = vmul.f32 %v473, %v479
  %483 = vrot.lane.b32.xlu0 %v481, 32
  %v484 = vpop.permute.xlu0 %483
  %v486 = vadd.f32 %v476, %v484
  %v487 = vtanh.pop %v486
  %489 = vrot.lane.b32.xlu0 %v487, 64
  %v490 = vpop.permute.xlu0 %489
  %v492 = vmul.f32 %v473, %v490
  %v493 = vpack.c.bf16 %v414, %v414
  %495 = vrot.lane.b32.xlu0 %v493, 32
  %v496 = vpop.permute.xlu0 %495
  %v498 = vsel %vm65, %v496, 0
  %500 = vmatprep.subr.bf16.mxu0 0
  %501 = vmatpush1.bf16.msra.mxu0 %v164
  %502 = vmatprep.subr.bf16.mxu0 0
  %503 = vmatpush1.bf16.msra.mxu0 %v165
  %504 = vmatprep.subr.bf16.mxu0 0
  %505 = vmatpush1.bf16.msra.mxu0 0
  %506 = vmatprep.subr.bf16.mxu0 0
  %507 = vmatpush1.bf16.msra.mxu0 0
  %508 = vmatprep.subr.bf16.mxu0 0
  %509 = vmatpush1.bf16.msra.mxu0 0
  %510 = vmatprep.subr.bf16.mxu0 0
  %511 = vmatpush1.bf16.msra.mxu0 0
  %512 = vmatprep.subr.bf16.mxu0 0
  %513 = vmatpush1.bf16.msra.mxu0 0
  %514 = vmatprep.subr.bf16.mxu0 0
  %515 = vmatpush1.bf16.msra.mxu0 0
  %516 = vmatprep.subr.bf16.mxu0 0
  %517 = vmatpush1.bf16.msra.mxu0 0
  %518 = vmatprep.subr.bf16.mxu0 0
  %519 = vmatpush1.bf16.msra.mxu0 0
  %520 = vmatprep.subr.bf16.mxu0 0
  %521 = vmatpush1.bf16.msra.mxu0 0
  %522 = vmatprep.subr.bf16.mxu0 0
  %523 = vmatpush1.bf16.msra.mxu0 0
  %524 = vmatprep.subr.bf16.mxu0 0
  %525 = vmatpush1.bf16.msra.mxu0 0
  %526 = vmatprep.subr.bf16.mxu0 0
  %527 = vmatpush1.bf16.msra.mxu0 0
  %528 = vmatprep.subr.bf16.mxu0 0
  %529 = vmatpush1.bf16.msra.mxu0 0
  %530 = vmatprep.subr.bf16.mxu0 0
  %531 = vmatpush1.bf16.msra.mxu0 0
  %532 = vmatprep.mubr.bf16.mxu0 0
  %533 = vmatmul.mubr.bf16.gmra.mrb[0].mxu0 %v498
  %v534 = vpop.f32.mrb[0].mxu0
  %v535 = vadd.f32 0.0, %v534
  %v536 = vpop.f32.mrb[0].mxu0
  %v537 = vpop.f32.mrb[0].mxu0
  %v538 = vpop.f32.mrb[0].mxu0
  %539 = vdwg.mxu0
  %v540 = vadd.f32 %v121, %v535
  %v541 = vxor.u32 %v540, 2147483648
  %v542 = vmul.f32 %v541, 1.442695
  %v543 = vpow.pop %v542
  %v544 = vadd.f32 %v543, 1.0
  %v545 = vrcp.pop %v544
  %v546 = vmul.f32 1.0, %v545
  %v547 = vmul.f32 %v546, 2.0
  %v548 = vsub.f32 %v547, 1.0
  %v549 = vmul.f32 %v546, %v408
  %551 = vrot.lane.b32.xlu0 %v548, 64
  %v552 = vpop.permute.xlu0 %551
  %v554 = vmul.f32 %v546, %v552
  %556 = vrot.lane.b32.xlu0 %v554, 32
  %v557 = vpop.permute.xlu0 %556
  %v559 = vadd.f32 %v549, %v557
  %v560 = vtanh.pop %v559
  %562 = vrot.lane.b32.xlu0 %v560, 64
  %v563 = vpop.permute.xlu0 %562
  %v565 = vmul.f32 %v546, %v563
  %567 = vrot.lane.b32.xlu0 %v565, 32
  %v568 = vpop.permute.xlu0 %567
  %571 = vrot.lane.b32.xlu0 %v492, 64
  %v572 = vpop.permute.xlu0 %571
  %v574 = vsel %vm65, %v568, %v572
  %v575 = vpack.c.bf16 %v574, %v574
  %v577 = vsel %vm273, %v575, 0
  %579 = vmatprep.subr.bf16.mxu0 0
  %580 = vmatpush1.bf16.msra.mxu0 %v265
  %581 = vmatprep.subr.bf16.mxu0 0
  %582 = vmatpush1.bf16.msra.mxu0 %v266
  %583 = vmatprep.subr.bf16.mxu0 0
  %584 = vmatpush1.bf16.msra.mxu0 %v267
  %585 = vmatprep.subr.bf16.mxu0 0
  %586 = vmatpush1.bf16.msra.mxu0 %v268
  %587 = vmatprep.subr.bf16.mxu0 0
  %588 = vmatpush1.bf16.msra.mxu0 0
  %589 = vmatprep.subr.bf16.mxu0 0
  %590 = vmatpush1.bf16.msra.mxu0 0
  %591 = vmatprep.subr.bf16.mxu0 0
  %592 = vmatpush1.bf16.msra.mxu0 0
  %593 = vmatprep.subr.bf16.mxu0 0
  %594 = vmatpush1.bf16.msra.mxu0 0
  %595 = vmatprep.subr.bf16.mxu0 0
  %596 = vmatpush1.bf16.msra.mxu0 0
  %597 = vmatprep.subr.bf16.mxu0 0
  %598 = vmatpush1.bf16.msra.mxu0 0
  %599 = vmatprep.subr.bf16.mxu0 0
  %600 = vmatpush1.bf16.msra.mxu0 0
  %601 = vmatprep.subr.bf16.mxu0 0
  %602 = vmatpush1.bf16.msra.mxu0 0
  %603 = vmatprep.subr.bf16.mxu0 0
  %604 = vmatpush1.bf16.msra.mxu0 0
  %605 = vmatprep.subr.bf16.mxu0 0
  %606 = vmatpush1.bf16.msra.mxu0 0
  %607 = vmatprep.subr.bf16.mxu0 0
  %608 = vmatpush1.bf16.msra.mxu0 0
  %609 = vmatprep.subr.bf16.mxu0 0
  %610 = vmatpush1.bf16.msra.mxu0 0
  %611 = vmatprep.mubr.bf16.mxu0 0
  %612 = vmatmul.mubr.bf16.gmra.mrb[0].mxu0 %v577
  %v613 = vpop.f32.mrb[0].mxu0
  %v614 = vadd.f32 %v247, %v613
  %v615 = vpop.f32.mrb[0].mxu0
  %v616 = vpop.f32.mrb[0].mxu0
  %v617 = vpop.f32.mrb[0].mxu0
  %618 = vdwg.mxu0
  %v619 = vxor.u32 %v614, 2147483648
  %v620 = vmul.f32 %v619, 1.442695
  %v621 = vpow.pop %v620
  %v622 = vadd.f32 %v621, 1.0
  %v623 = vrcp.pop %v622
  %v624 = vmul.f32 1.0, %v623
  %v625 = vmul.f32 %v624, 2.0
  %v626 = vsub.f32 %v625, 1.0
  %v627 = vmul.f32 %v624, %v486
  %629 = vrot.lane.b32.xlu0 %v626, 64
  %v630 = vpop.permute.xlu0 %629
  %v632 = vmul.f32 %v624, %v630
  %634 = vrot.lane.b32.xlu0 %v632, 32
  %v635 = vpop.permute.xlu0 %634
  %v637 = vadd.f32 %v627, %v635
  %v638 = vtanh.pop %v637
  %640 = vrot.lane.b32.xlu0 %v638, 64
  %v641 = vpop.permute.xlu0 %640
  %v643 = vmul.f32 %v624, %v641
  %v644 = vpack.c.bf16 %v565, %v565
  %646 = vrot.lane.b32.xlu0 %v644, 32
  %v647 = vpop.permute.xlu0 %646
  %v649 = vsel %vm65, %v647, 0
  %651 = vmatprep.subr.bf16.mxu0 0
  %652 = vmatpush1.bf16.msra.mxu0 %v164
  %653 = vmatprep.subr.bf16.mxu0 0
  %654 = vmatpush1.bf16.msra.mxu0 %v165
  %655 = vmatprep.subr.bf16.mxu0 0
  %656 = vmatpush1.bf16.msra.mxu0 0
  %657 = vmatprep.subr.bf16.mxu0 0
  %658 = vmatpush1.bf16.msra.mxu0 0
  %659 = vmatprep.subr.bf16.mxu0 0
  %660 = vmatpush1.bf16.msra.mxu0 0
  %661 = vmatprep.subr.bf16.mxu0 0
  %662 = vmatpush1.bf16.msra.mxu0 0
  %663 = vmatprep.subr.bf16.mxu0 0
  %664 = vmatpush1.bf16.msra.mxu0 0
  %665 = vmatprep.subr.bf16.mxu0 0
  %666 = vmatpush1.bf16.msra.mxu0 0
  %667 = vmatprep.subr.bf16.mxu0 0
  %668 = vmatpush1.bf16.msra.mxu0 0
  %669 = vmatprep.subr.bf16.mxu0 0
  %670 = vmatpush1.bf16.msra.mxu0 0
  %671 = vmatprep.subr.bf16.mxu0 0
  %672 = vmatpush1.bf16.msra.mxu0 0
  %673 = vmatprep.subr.bf16.mxu0 0
  %674 = vmatpush1.bf16.msra.mxu0 0
  %675 = vmatprep.subr.bf16.mxu0 0
  %676 = vmatpush1.bf16.msra.mxu0 0
  %677 = vmatprep.subr.bf16.mxu0 0
  %678 = vmatpush1.bf16.msra.mxu0 0
  %679 = vmatprep.subr.bf16.mxu0 0
  %680 = vmatpush1.bf16.msra.mxu0 0
  %681 = vmatprep.subr.bf16.mxu0 0
  %682 = vmatpush1.bf16.msra.mxu0 0
  %683 = vmatprep.mubr.bf16.mxu0 0
  %684 = vmatmul.mubr.bf16.gmra.mrb[0].mxu0 %v649
  %v685 = vpop.f32.mrb[0].mxu0
  %v686 = vadd.f32 0.0, %v685
  %v687 = vpop.f32.mrb[0].mxu0
  %v688 = vpop.f32.mrb[0].mxu0
  %v689 = vpop.f32.mrb[0].mxu0
  %690 = vdwg.mxu0
  %v691 = vadd.f32 %v124, %v686
  %v692 = vxor.u32 %v691, 2147483648
  %v693 = vmul.f32 %v692, 1.442695
  %v694 = vpow.pop %v693
  %v695 = vadd.f32 %v694, 1.0
  %v696 = vrcp.pop %v695
  %v697 = vmul.f32 1.0, %v696
  %v698 = vmul.f32 %v697, 2.0
  %v699 = vsub.f32 %v698, 1.0
  %v700 = vmul.f32 %v697, %v559
  %702 = vrot.lane.b32.xlu0 %v699, 64
  %v703 = vpop.permute.xlu0 %702
  %v705 = vmul.f32 %v697, %v703
  %707 = vrot.lane.b32.xlu0 %v705, 32
  %v708 = vpop.permute.xlu0 %707
  %v710 = vadd.f32 %v700, %v708
  %v711 = vtanh.pop %v710
  %713 = vrot.lane.b32.xlu0 %v711, 64
  %v714 = vpop.permute.xlu0 %713
  %v716 = vmul.f32 %v697, %v714
  %718 = vrot.lane.b32.xlu0 %v716, 32
  %v719 = vpop.permute.xlu0 %718
  %722 = vrot.lane.b32.xlu0 %v643, 64
  %v723 = vpop.permute.xlu0 %722
  %v725 = vsel %vm65, %v719, %v723
  %v726 = vpack.c.bf16 %v725, %v725
  %v728 = vsel %vm273, %v726, 0
  %730 = vmatprep.subr.bf16.mxu0 0
  %731 = vmatpush1.bf16.msra.mxu0 %v265
  %732 = vmatprep.subr.bf16.mxu0 0
  %733 = vmatpush1.bf16.msra.mxu0 %v266
  %734 = vmatprep.subr.bf16.mxu0 0
  %735 = vmatpush1.bf16.msra.mxu0 %v267
  %736 = vmatprep.subr.bf16.mxu0 0
  %737 = vmatpush1.bf16.msra.mxu0 %v268
  %738 = vmatprep.subr.bf16.mxu0 0
  %739 = vmatpush1.bf16.msra.mxu0 0
  %740 = vmatprep.subr.bf16.mxu0 0
  %741 = vmatpush1.bf16.msra.mxu0 0
  %742 = vmatprep.subr.bf16.mxu0 0
  %743 = vmatpush1.bf16.msra.mxu0 0
  %744 = vmatprep.subr.bf16.mxu0 0
  %745 = vmatpush1.bf16.msra.mxu0 0
  %746 = vmatprep.subr.bf16.mxu0 0
  %747 = vmatpush1.bf16.msra.mxu0 0
  %748 = vmatprep.subr.bf16.mxu0 0
  %749 = vmatpush1.bf16.msra.mxu0 0
  %750 = vmatprep.subr.bf16.mxu0 0
  %751 = vmatpush1.bf16.msra.mxu0 0
  %752 = vmatprep.subr.bf16.mxu0 0
  %753 = vmatpush1.bf16.msra.mxu0 0
  %754 = vmatprep.subr.bf16.mxu0 0
  %755 = vmatpush1.bf16.msra.mxu0 0
  %756 = vmatprep.subr.bf16.mxu0 0
  %757 = vmatpush1.bf16.msra.mxu0 0
  %758 = vmatprep.subr.bf16.mxu0 0
  %759 = vmatpush1.bf16.msra.mxu0 0
  %760 = vmatprep.subr.bf16.mxu0 0
  %761 = vmatpush1.bf16.msra.mxu0 0
  %762 = vmatprep.mubr.bf16.mxu0 0
  %763 = vmatmul.mubr.bf16.gmra.mrb[0].mxu0 %v728
  %v764 = vpop.f32.mrb[0].mxu0
  %v765 = vadd.f32 %v247, %v764
  %v766 = vpop.f32.mrb[0].mxu0
  %v767 = vpop.f32.mrb[0].mxu0
  %v768 = vpop.f32.mrb[0].mxu0
  %769 = vdwg.mxu0
  %v770 = vxor.u32 %v765, 2147483648
  %v771 = vmul.f32 %v770, 1.442695
  %v772 = vpow.pop %v771
  %v773 = vadd.f32 %v772, 1.0
  %v774 = vrcp.pop %v773
  %v775 = vmul.f32 1.0, %v774
  %v776 = vmul.f32 %v775, 2.0
  %v777 = vsub.f32 %v776, 1.0
  %v778 = vmul.f32 %v775, %v637
  %780 = vrot.lane.b32.xlu0 %v777, 64
  %v781 = vpop.permute.xlu0 %780
  %v783 = vmul.f32 %v775, %v781
  %785 = vrot.lane.b32.xlu0 %v783, 32
  %v786 = vpop.permute.xlu0 %785
  %v788 = vadd.f32 %v778, %v786
  %v789 = vtanh.pop %v788
  %791 = vrot.lane.b32.xlu0 %v789, 64
  %v792 = vpop.permute.xlu0 %791
  %v794 = vmul.f32 %v775, %v792
  %v795 = vpack.c.bf16 %v716, %v716
  %797 = vrot.lane.b32.xlu0 %v795, 32
  %v798 = vpop.permute.xlu0 %797
  %v800 = vsel %vm65, %v798, 0
  %802 = vmatprep.subr.bf16.mxu0 0
  %803 = vmatpush1.bf16.msra.mxu0 %v164
  %804 = vmatprep.subr.bf16.mxu0 0
  %805 = vmatpush1.bf16.msra.mxu0 %v165
  %806 = vmatprep.subr.bf16.mxu0 0
  %807 = vmatpush1.bf16.msra.mxu0 0
  %808 = vmatprep.subr.bf16.mxu0 0
  %809 = vmatpush1.bf16.msra.mxu0 0
  %810 = vmatprep.subr.bf16.mxu0 0
  %811 = vmatpush1.bf16.msra.mxu0 0
  %812 = vmatprep.subr.bf16.mxu0 0
  %813 = vmatpush1.bf16.msra.mxu0 0
  %814 = vmatprep.subr.bf16.mxu0 0
  %815 = vmatpush1.bf16.msra.mxu0 0
  %816 = vmatprep.subr.bf16.mxu0 0
  %817 = vmatpush1.bf16.msra.mxu0 0
  %818 = vmatprep.subr.bf16.mxu0 0
  %819 = vmatpush1.bf16.msra.mxu0 0
  %820 = vmatprep.subr.bf16.mxu0 0
  %821 = vmatpush1.bf16.msra.mxu0 0
  %822 = vmatprep.subr.bf16.mxu0 0
  %823 = vmatpush1.bf16.msra.mxu0 0
  %824 = vmatprep.subr.bf16.mxu0 0
  %825 = vmatpush1.bf16.msra.mxu0 0
  %826 = vmatprep.subr.bf16.mxu0 0
  %827 = vmatpush1.bf16.msra.mxu0 0
  %828 = vmatprep.subr.bf16.mxu0 0
  %829 = vmatpush1.bf16.msra.mxu0 0
  %830 = vmatprep.subr.bf16.mxu0 0
  %831 = vmatpush1.bf16.msra.mxu0 0
  %832 = vmatprep.subr.bf16.mxu0 0
  %833 = vmatpush1.bf16.msra.mxu0 0
  %834 = vmatprep.mubr.bf16.mxu0 0
  %835 = vmatmul.mubr.bf16.gmra.mrb[0].mxu0 %v800
  %v836 = vpop.f32.mrb[0].mxu0
  %v837 = vadd.f32 0.0, %v836
  %v838 = vpop.f32.mrb[0].mxu0
  %v839 = vpop.f32.mrb[0].mxu0
  %v840 = vpop.f32.mrb[0].mxu0
  %841 = vdwg.mxu0
  %v842 = vadd.f32 %v129, %v837
  %v843 = vxor.u32 %v842, 2147483648
  %v844 = vmul.f32 %v843, 1.442695
  %v845 = vpow.pop %v844
  %v846 = vadd.f32 %v845, 1.0
  %v847 = vrcp.pop %v846
  %v848 = vmul.f32 1.0, %v847
  %v849 = vmul.f32 %v848, 2.0
  %v850 = vsub.f32 %v849, 1.0
  %v851 = vmul.f32 %v848, %v710
  %853 = vrot.lane.b32.xlu0 %v850, 64
  %v854 = vpop.permute.xlu0 %853
  %v856 = vmul.f32 %v848, %v854
  %858 = vrot.lane.b32.xlu0 %v856, 32
  %v859 = vpop.permute.xlu0 %858
  %v861 = vadd.f32 %v851, %v859
  %v862 = vtanh.pop %v861
  %864 = vrot.lane.b32.xlu0 %v862, 64
  %v865 = vpop.permute.xlu0 %864
  %v867 = vmul.f32 %v848, %v865
  %869 = vrot.lane.b32.xlu0 %v867, 32
  %v870 = vpop.permute.xlu0 %869
  %873 = vrot.lane.b32.xlu0 %v794, 64
  %v874 = vpop.permute.xlu0 %873
  %v876 = vsel %vm65, %v870, %v874
  %v877 = vpack.c.bf16 %v876, %v876
  %v879 = vsel %vm273, %v877, 0
  %881 = vmatprep.subr.bf16.mxu0 0
  %882 = vmatpush1.bf16.msra.mxu0 %v265
  %883 = vmatprep.subr.bf16.mxu0 0
  %884 = vmatpush1.bf16.msra.mxu0 %v266
  %885 = vmatprep.subr.bf16.mxu0 0
  %886 = vmatpush1.bf16.msra.mxu0 %v267
  %887 = vmatprep.subr.bf16.mxu0 0
  %888 = vmatpush1.bf16.msra.mxu0 %v268
  %889 = vmatprep.subr.bf16.mxu0 0
  %890 = vmatpush1.bf16.msra.mxu0 0
  %891 = vmatprep.subr.bf16.mxu0 0
  %892 = vmatpush1.bf16.msra.mxu0 0
  %893 = vmatprep.subr.bf16.mxu0 0
  %894 = vmatpush1.bf16.msra.mxu0 0
  %895 = vmatprep.subr.bf16.mxu0 0
  %896 = vmatpush1.bf16.msra.mxu0 0
  %897 = vmatprep.subr.bf16.mxu0 0
  %898 = vmatpush1.bf16.msra.mxu0 0
  %899 = vmatprep.subr.bf16.mxu0 0
  %900 = vmatpush1.bf16.msra.mxu0 0
  %901 = vmatprep.subr.bf16.mxu0 0
  %902 = vmatpush1.bf16.msra.mxu0 0
  %903 = vmatprep.subr.bf16.mxu0 0
  %904 = vmatpush1.bf16.msra.mxu0 0
  %905 = vmatprep.subr.bf16.mxu0 0
  %906 = vmatpush1.bf16.msra.mxu0 0
  %907 = vmatprep.subr.bf16.mxu0 0
  %908 = vmatpush1.bf16.msra.mxu0 0
  %909 = vmatprep.subr.bf16.mxu0 0
  %910 = vmatpush1.bf16.msra.mxu0 0
  %911 = vmatprep.subr.bf16.mxu0 0
  %912 = vmatpush1.bf16.msra.mxu0 0
  %913 = vmatprep.mubr.bf16.mxu0 0
  %914 = vmatmul.mubr.bf16.gmra.mrb[0].mxu0 %v879
  %v915 = vpop.f32.mrb[0].mxu0
  %v916 = vadd.f32 %v247, %v915
  %v917 = vpop.f32.mrb[0].mxu0
  %v918 = vpop.f32.mrb[0].mxu0
  %v919 = vpop.f32.mrb[0].mxu0
  %920 = vdwg.mxu0
  %v921 = vxor.u32 %v916, 2147483648
  %v922 = vmul.f32 %v921, 1.442695
  %v923 = vpow.pop %v922
  %v924 = vadd.f32 %v923, 1.0
  %v925 = vrcp.pop %v924
  %v926 = vmul.f32 1.0, %v925
  %v927 = vmul.f32 %v926, 2.0
  %v928 = vsub.f32 %v927, 1.0
  %v929 = vmul.f32 %v926, %v788
  %931 = vrot.lane.b32.xlu0 %v928, 64
  %v932 = vpop.permute.xlu0 %931
  %v934 = vmul.f32 %v926, %v932
  %936 = vrot.lane.b32.xlu0 %v934, 32
  %v937 = vpop.permute.xlu0 %936
  %v939 = vadd.f32 %v929, %v937
  %v940 = vtanh.pop %v939
  %942 = vrot.lane.b32.xlu0 %v940, 64
  %v943 = vpop.permute.xlu0 %942
  %v945 = vmul.f32 %v926, %v943
  %v946 = vpack.c.bf16 %v867, %v867
  %948 = vrot.lane.b32.xlu0 %v946, 32
  %v949 = vpop.permute.xlu0 %948
  %v951 = vsel %vm65, %v949, 0
  %953 = vmatprep.subr.bf16.mxu0 0
  %954 = vmatpush1.bf16.msra.mxu0 %v164
  %955 = vmatprep.subr.bf16.mxu0 0
  %956 = vmatpush1.bf16.msra.mxu0 %v165
  %957 = vmatprep.subr.bf16.mxu0 0
  %958 = vmatpush1.bf16.msra.mxu0 0
  %959 = vmatprep.subr.bf16.mxu0 0
  %960 = vmatpush1.bf16.msra.mxu0 0
  %961 = vmatprep.subr.bf16.mxu0 0
  %962 = vmatpush1.bf16.msra.mxu0 0
  %963 = vmatprep.subr.bf16.mxu0 0
  %964 = vmatpush1.bf16.msra.mxu0 0
  %965 = vmatprep.subr.bf16.mxu0 0
  %966 = vmatpush1.bf16.msra.mxu0 0
  %967 = vmatprep.subr.bf16.mxu0 0
  %968 = vmatpush1.bf16.msra.mxu0 0
  %969 = vmatprep.subr.bf16.mxu0 0
  %970 = vmatpush1.bf16.msra.mxu0 0
  %971 = vmatprep.subr.bf16.mxu0 0
  %972 = vmatpush1.bf16.msra.mxu0 0
  %973 = vmatprep.subr.bf16.mxu0 0
  %974 = vmatpush1.bf16.msra.mxu0 0
  %975 = vmatprep.subr.bf16.mxu0 0
  %976 = vmatpush1.bf16.msra.mxu0 0
  %977 = vmatprep.subr.bf16.mxu0 0
  %978 = vmatpush1.bf16.msra.mxu0 0
  %979 = vmatprep.subr.bf16.mxu0 0
  %980 = vmatpush1.bf16.msra.mxu0 0
  %981 = vmatprep.subr.bf16.mxu0 0
  %982 = vmatpush1.bf16.msra.mxu0 0
  %983 = vmatprep.subr.bf16.mxu0 0
  %984 = vmatpush1.bf16.msra.mxu0 0
  %985 = vmatprep.mubr.bf16.mxu0 0
  %986 = vmatmul.mubr.bf16.gmra.mrb[0].mxu0 %v951
  %v987 = vpop.f32.mrb[0].mxu0
  %v988 = vadd.f32 0.0, %v987
  %v989 = vpop.f32.mrb[0].mxu0
  %v990 = vpop.f32.mrb[0].mxu0
  %v991 = vpop.f32.mrb[0].mxu0
  %992 = vdwg.mxu0
  %v993 = vadd.f32 %v132, %v988
  %v994 = vxor.u32 %v993, 2147483648
  %v995 = vmul.f32 %v994, 1.442695
  %v996 = vpow.pop %v995
  %v997 = vadd.f32 %v996, 1.0
  %v998 = vrcp.pop %v997
  %v999 = vmul.f32 1.0, %v998
  %v1000 = vmul.f32 %v999, 2.0
  %v1001 = vsub.f32 %v1000, 1.0
  %v1002 = vmul.f32 %v999, %v861
  %1004 = vrot.lane.b32.xlu0 %v1001, 64
  %v1005 = vpop.permute.xlu0 %1004
  %v1007 = vmul.f32 %v999, %v1005
  %1009 = vrot.lane.b32.xlu0 %v1007, 32
  %v1010 = vpop.permute.xlu0 %1009
  %v1012 = vadd.f32 %v1002, %v1010
  %v1013 = vtanh.pop %v1012
  %1015 = vrot.lane.b32.xlu0 %v1013, 64
  %v1016 = vpop.permute.xlu0 %1015
  %v1018 = vmul.f32 %v999, %v1016
  %1020 = vrot.lane.b32.xlu0 %v1018, 32
  %v1021 = vpop.permute.xlu0 %1020
  %1024 = vrot.lane.b32.xlu0 %v945, 64
  %v1025 = vpop.permute.xlu0 %1024
  %v1027 = vsel %vm65, %v1021, %v1025
  %v1028 = vpack.c.bf16 %v1027, %v1027
  %v1030 = vsel %vm273, %v1028, 0
  %1032 = vmatprep.subr.bf16.mxu0 0
  %1033 = vmatpush1.bf16.msra.mxu0 %v265
  %1034 = vmatprep.subr.bf16.mxu0 0
  %1035 = vmatpush1.bf16.msra.mxu0 %v266
  %1036 = vmatprep.subr.bf16.mxu0 0
  %1037 = vmatpush1.bf16.msra.mxu0 %v267
  %1038 = vmatprep.subr.bf16.mxu0 0
  %1039 = vmatpush1.bf16.msra.mxu0 %v268
  %1040 = vmatprep.subr.bf16.mxu0 0
  %1041 = vmatpush1.bf16.msra.mxu0 0
  %1042 = vmatprep.subr.bf16.mxu0 0
  %1043 = vmatpush1.bf16.msra.mxu0 0
  %1044 = vmatprep.subr.bf16.mxu0 0
  %1045 = vmatpush1.bf16.msra.mxu0 0
  %1046 = vmatprep.subr.bf16.mxu0 0
  %1047 = vmatpush1.bf16.msra.mxu0 0
  %1048 = vmatprep.subr.bf16.mxu0 0
  %1049 = vmatpush1.bf16.msra.mxu0 0
  %1050 = vmatprep.subr.bf16.mxu0 0
  %1051 = vmatpush1.bf16.msra.mxu0 0
  %1052 = vmatprep.subr.bf16.mxu0 0
  %1053 = vmatpush1.bf16.msra.mxu0 0
  %1054 = vmatprep.subr.bf16.mxu0 0
  %1055 = vmatpush1.bf16.msra.mxu0 0
  %1056 = vmatprep.subr.bf16.mxu0 0
  %1057 = vmatpush1.bf16.msra.mxu0 0
  %1058 = vmatprep.subr.bf16.mxu0 0
  %1059 = vmatpush1.bf16.msra.mxu0 0
  %1060 = vmatprep.subr.bf16.mxu0 0
  %1061 = vmatpush1.bf16.msra.mxu0 0
  %1062 = vmatprep.subr.bf16.mxu0 0
  %1063 = vmatpush1.bf16.msra.mxu0 0
  %1064 = vmatprep.mubr.bf16.mxu0 0
  %1065 = vmatmul.mubr.bf16.gmra.mrb[0].mxu0 %v1030
  %v1066 = vpop.f32.mrb[0].mxu0
  %v1067 = vadd.f32 %v247, %v1066
  %v1068 = vpop.f32.mrb[0].mxu0
  %v1069 = vpop.f32.mrb[0].mxu0
  %v1070 = vpop.f32.mrb[0].mxu0
  %1071 = vdwg.mxu0
  %v1072 = vxor.u32 %v1067, 2147483648
  %v1073 = vmul.f32 %v1072, 1.442695
  %v1074 = vpow.pop %v1073
  %v1075 = vadd.f32 %v1074, 1.0
  %v1076 = vrcp.pop %v1075
  %v1077 = vmul.f32 1.0, %v1076
  %v1078 = vmul.f32 %v1077, 2.0
  %v1079 = vsub.f32 %v1078, 1.0
  %v1080 = vmul.f32 %v1077, %v939
  %1082 = vrot.lane.b32.xlu0 %v1079, 64
  %v1083 = vpop.permute.xlu0 %1082
  %v1085 = vmul.f32 %v1077, %v1083
  %1087 = vrot.lane.b32.xlu0 %v1085, 32
  %v1088 = vpop.permute.xlu0 %1087
  %v1090 = vadd.f32 %v1080, %v1088
  %v1091 = vtanh.pop %v1090
  %1093 = vrot.lane.b32.xlu0 %v1091, 64
  %v1094 = vpop.permute.xlu0 %1093
  %v1096 = vmul.f32 %v1077, %v1094
  %v1097 = vpack.c.bf16 %v1018, %v1018
  %1099 = vrot.lane.b32.xlu0 %v1097, 32
  %v1100 = vpop.permute.xlu0 %1099
  %v1102 = vsel %vm65, %v1100, 0
  %1104 = vmatprep.subr.bf16.mxu0 0
  %1105 = vmatpush1.bf16.msra.mxu0 %v164
  %1106 = vmatprep.subr.bf16.mxu0 0
  %1107 = vmatpush1.bf16.msra.mxu0 %v165
  %1108 = vmatprep.subr.bf16.mxu0 0
  %1109 = vmatpush1.bf16.msra.mxu0 0
  %1110 = vmatprep.subr.bf16.mxu0 0
  %1111 = vmatpush1.bf16.msra.mxu0 0
  %1112 = vmatprep.subr.bf16.mxu0 0
  %1113 = vmatpush1.bf16.msra.mxu0 0
  %1114 = vmatprep.subr.bf16.mxu0 0
  %1115 = vmatpush1.bf16.msra.mxu0 0
  %1116 = vmatprep.subr.bf16.mxu0 0
  %1117 = vmatpush1.bf16.msra.mxu0 0
  %1118 = vmatprep.subr.bf16.mxu0 0
  %1119 = vmatpush1.bf16.msra.mxu0 0
  %1120 = vmatprep.subr.bf16.mxu0 0
  %1121 = vmatpush1.bf16.msra.mxu0 0
  %1122 = vmatprep.subr.bf16.mxu0 0
  %1123 = vmatpush1.bf16.msra.mxu0 0
  %1124 = vmatprep.subr.bf16.mxu0 0
  %1125 = vmatpush1.bf16.msra.mxu0 0
  %1126 = vmatprep.subr.bf16.mxu0 0
  %1127 = vmatpush1.bf16.msra.mxu0 0
  %1128 = vmatprep.subr.bf16.mxu0 0
  %1129 = vmatpush1.bf16.msra.mxu0 0
  %1130 = vmatprep.subr.bf16.mxu0 0
  %1131 = vmatpush1.bf16.msra.mxu0 0
  %1132 = vmatprep.subr.bf16.mxu0 0
  %1133 = vmatpush1.bf16.msra.mxu0 0
  %1134 = vmatprep.subr.bf16.mxu0 0
  %1135 = vmatpush1.bf16.msra.mxu0 0
  %1136 = vmatprep.mubr.bf16.mxu0 0
  %1137 = vmatmul.mubr.bf16.gmra.mrb[0].mxu0 %v1102
  %v1138 = vpop.f32.mrb[0].mxu0
  %v1139 = vadd.f32 0.0, %v1138
  %v1140 = vpop.f32.mrb[0].mxu0
  %v1141 = vpop.f32.mrb[0].mxu0
  %v1142 = vpop.f32.mrb[0].mxu0
  %1143 = vdwg.mxu0
  %v1144 = vadd.f32 %v137, %v1139
  %v1145 = vxor.u32 %v1144, 2147483648
  %v1146 = vmul.f32 %v1145, 1.442695
  %v1147 = vpow.pop %v1146
  %v1148 = vadd.f32 %v1147, 1.0
  %v1149 = vrcp.pop %v1148
  %v1150 = vmul.f32 1.0, %v1149
  %v1151 = vmul.f32 %v1150, 2.0
  %v1152 = vsub.f32 %v1151, 1.0
  %v1153 = vmul.f32 %v1150, %v1012
  %1155 = vrot.lane.b32.xlu0 %v1152, 64
  %v1156 = vpop.permute.xlu0 %1155
  %v1158 = vmul.f32 %v1150, %v1156
  %1160 = vrot.lane.b32.xlu0 %v1158, 32
  %v1161 = vpop.permute.xlu0 %1160
  %v1163 = vadd.f32 %v1153, %v1161
  %v1164 = vtanh.pop %v1163
  %1166 = vrot.lane.b32.xlu0 %v1164, 64
  %v1167 = vpop.permute.xlu0 %1166
  %v1169 = vmul.f32 %v1150, %v1167
  %1171 = vrot.lane.b32.xlu0 %v1169, 32
  %v1172 = vpop.permute.xlu0 %1171
  %1175 = vrot.lane.b32.xlu0 %v1096, 64
  %v1176 = vpop.permute.xlu0 %1175
  %v1178 = vsel %vm65, %v1172, %v1176
  %v1179 = vpack.c.bf16 %v1178, %v1178
  %v1181 = vsel %vm273, %v1179, 0
  %1183 = vmatprep.subr.bf16.mxu0 0
  %1184 = vmatpush1.bf16.msra.mxu0 %v265
  %1185 = vmatprep.subr.bf16.mxu0 0
  %1186 = vmatpush1.bf16.msra.mxu0 %v266
  %1187 = vmatprep.subr.bf16.mxu0 0
  %1188 = vmatpush1.bf16.msra.mxu0 %v267
  %1189 = vmatprep.subr.bf16.mxu0 0
  %1190 = vmatpush1.bf16.msra.mxu0 %v268
  %1191 = vmatprep.subr.bf16.mxu0 0
  %1192 = vmatpush1.bf16.msra.mxu0 0
  %1193 = vmatprep.subr.bf16.mxu0 0
  %1194 = vmatpush1.bf16.msra.mxu0 0
  %1195 = vmatprep.subr.bf16.mxu0 0
  %1196 = vmatpush1.bf16.msra.mxu0 0
  %1197 = vmatprep.subr.bf16.mxu0 0
  %1198 = vmatpush1.bf16.msra.mxu0 0
  %1199 = vmatprep.subr.bf16.mxu0 0
  %1200 = vmatpush1.bf16.msra.mxu0 0
  %1201 = vmatprep.subr.bf16.mxu0 0
  %1202 = vmatpush1.bf16.msra.mxu0 0
  %1203 = vmatprep.subr.bf16.mxu0 0
  %1204 = vmatpush1.bf16.msra.mxu0 0
  %1205 = vmatprep.subr.bf16.mxu0 0
  %1206 = vmatpush1.bf16.msra.mxu0 0
  %1207 = vmatprep.subr.bf16.mxu0 0
  %1208 = vmatpush1.bf16.msra.mxu0 0
  %1209 = vmatprep.subr.bf16.mxu0 0
  %1210 = vmatpush1.bf16.msra.mxu0 0
  %1211 = vmatprep.subr.bf16.mxu0 0
  %1212 = vmatpush1.bf16.msra.mxu0 0
  %1213 = vmatprep.subr.bf16.mxu0 0
  %1214 = vmatpush1.bf16.msra.mxu0 0
  %1215 = vmatprep.mubr.bf16.mxu0 0
  %1216 = vmatmul.mubr.bf16.gmra.mrb[0].mxu0 %v1181
  %v1217 = vpop.f32.mrb[0].mxu0
  %v1218 = vadd.f32 %v247, %v1217
  %v1219 = vpop.f32.mrb[0].mxu0
  %v1220 = vpop.f32.mrb[0].mxu0
  %v1221 = vpop.f32.mrb[0].mxu0
  %1222 = vdwg.mxu0
  %v1223 = vxor.u32 %v1218, 2147483648
  %v1224 = vmul.f32 %v1223, 1.442695
  %v1225 = vpow.pop %v1224
  %v1226 = vadd.f32 %v1225, 1.0
  %v1227 = vrcp.pop %v1226
  %v1228 = vmul.f32 1.0, %v1227
  %v1229 = vmul.f32 %v1228, 2.0
  %v1230 = vsub.f32 %v1229, 1.0
  %v1231 = vmul.f32 %v1228, %v1090
  %1233 = vrot.lane.b32.xlu0 %v1230, 64
  %v1234 = vpop.permute.xlu0 %1233
  %v1236 = vmul.f32 %v1228, %v1234
  %1238 = vrot.lane.b32.xlu0 %v1236, 32
  %v1239 = vpop.permute.xlu0 %1238
  %v1241 = vadd.f32 %v1231, %v1239
  %v1242 = vtanh.pop %v1241
  %1244 = vrot.lane.b32.xlu0 %v1242, 64
  %v1245 = vpop.permute.xlu0 %1244
  %v1247 = vmul.f32 %v1228, %v1245
  %v1248 = vpack.c.bf16 %v1169, %v1169
  %1250 = vrot.lane.b32.xlu0 %v1248, 32
  %v1251 = vpop.permute.xlu0 %1250
  %v1253 = vsel %vm65, %v1251, 0
  %1255 = vmatprep.subr.bf16.mxu0 0
  %1256 = vmatpush1.bf16.msra.mxu0 %v164
  %1257 = vmatprep.subr.bf16.mxu0 0
  %1258 = vmatpush1.bf16.msra.mxu0 %v165
  %1259 = vmatprep.subr.bf16.mxu0 0
  %1260 = vmatpush1.bf16.msra.mxu0 0
  %1261 = vmatprep.subr.bf16.mxu0 0
  %1262 = vmatpush1.bf16.msra.mxu0 0
  %1263 = vmatprep.subr.bf16.mxu0 0
  %1264 = vmatpush1.bf16.msra.mxu0 0
  %1265 = vmatprep.subr.bf16.mxu0 0
  %1266 = vmatpush1.bf16.msra.mxu0 0
  %1267 = vmatprep.subr.bf16.mxu0 0
  %1268 = vmatpush1.bf16.msra.mxu0 0
  %1269 = vmatprep.subr.bf16.mxu0 0
  %1270 = vmatpush1.bf16.msra.mxu0 0
  %1271 = vmatprep.subr.bf16.mxu0 0
  %1272 = vmatpush1.bf16.msra.mxu0 0
  %1273 = vmatprep.subr.bf16.mxu0 0
  %1274 = vmatpush1.bf16.msra.mxu0 0
  %1275 = vmatprep.subr.bf16.mxu0 0
  %1276 = vmatpush1.bf16.msra.mxu0 0
  %1277 = vmatprep.subr.bf16.mxu0 0
  %1278 = vmatpush1.bf16.msra.mxu0 0
  %1279 = vmatprep.subr.bf16.mxu0 0
  %1280 = vmatpush1.bf16.msra.mxu0 0
  %1281 = vmatprep.subr.bf16.mxu0 0
  %1282 = vmatpush1.bf16.msra.mxu0 0
  %1283 = vmatprep.subr.bf16.mxu0 0
  %1284 = vmatpush1.bf16.msra.mxu0 0
  %1285 = vmatprep.subr.bf16.mxu0 0
  %1286 = vmatpush1.bf16.msra.mxu0 0
  %1287 = vmatprep.mubr.bf16.mxu0 0
  %1288 = vmatmul.mubr.bf16.gmra.mrb[0].mxu0 %v1253
  %v1289 = vpop.f32.mrb[0].mxu0
  %v1290 = vadd.f32 0.0, %v1289
  %v1291 = vpop.f32.mrb[0].mxu0
  %v1292 = vpop.f32.mrb[0].mxu0
  %v1293 = vpop.f32.mrb[0].mxu0
  %1294 = vdwg.mxu0
  %v1295 = vadd.f32 %v140, %v1290
  %v1296 = vxor.u32 %v1295, 2147483648
  %v1297 = vmul.f32 %v1296, 1.442695
  %v1298 = vpow.pop %v1297
  %v1299 = vadd.f32 %v1298, 1.0
  %v1300 = vrcp.pop %v1299
  %v1301 = vmul.f32 1.0, %v1300
  %v1302 = vmul.f32 %v1301, 2.0
  %v1303 = vsub.f32 %v1302, 1.0
  %v1304 = vmul.f32 %v1301, %v1163
  %1306 = vrot.lane.b32.xlu0 %v1303, 64
  %v1307 = vpop.permute.xlu0 %1306
  %v1309 = vmul.f32 %v1301, %v1307
  %1311 = vrot.lane.b32.xlu0 %v1309, 32
  %v1312 = vpop.permute.xlu0 %1311
  %v1314 = vadd.f32 %v1304, %v1312
  %v1315 = vtanh.pop %v1314
  %1317 = vrot.lane.b32.xlu0 %v1315, 64
  %v1318 = vpop.permute.xlu0 %1317
  %v1320 = vmul.f32 %v1301, %v1318
  %1322 = vrot.lane.b32.xlu0 %v1320, 32
  %v1323 = vpop.permute.xlu0 %1322
  %1326 = vrot.lane.b32.xlu0 %v1247, 64
  %v1327 = vpop.permute.xlu0 %1326
  %v1329 = vsel %vm65, %v1323, %v1327
  %v1330 = vpack.c.bf16 %v1329, %v1329
  %v1332 = vsel %vm273, %v1330, 0
  %1334 = vmatprep.subr.bf16.mxu0 0
  %1335 = vmatpush1.bf16.msra.mxu0 %v265
  %1336 = vmatprep.subr.bf16.mxu0 0
  %1337 = vmatpush1.bf16.msra.mxu0 %v266
  %1338 = vmatprep.subr.bf16.mxu0 0
  %1339 = vmatpush1.bf16.msra.mxu0 %v267
  %1340 = vmatprep.subr.bf16.mxu0 0
  %1341 = vmatpush1.bf16.msra.mxu0 %v268
  %1342 = vmatprep.subr.bf16.mxu0 0
  %1343 = vmatpush1.bf16.msra.mxu0 0
  %1344 = vmatprep.subr.bf16.mxu0 0
  %1345 = vmatpush1.bf16.msra.mxu0 0
  %1346 = vmatprep.subr.bf16.mxu0 0
  %1347 = vmatpush1.bf16.msra.mxu0 0
  %1348 = vmatprep.subr.bf16.mxu0 0
  %1349 = vmatpush1.bf16.msra.mxu0 0
  %1350 = vmatprep.subr.bf16.mxu0 0
  %1351 = vmatpush1.bf16.msra.mxu0 0
  %1352 = vmatprep.subr.bf16.mxu0 0
  %1353 = vmatpush1.bf16.msra.mxu0 0
  %1354 = vmatprep.subr.bf16.mxu0 0
  %1355 = vmatpush1.bf16.msra.mxu0 0
  %1356 = vmatprep.subr.bf16.mxu0 0
  %1357 = vmatpush1.bf16.msra.mxu0 0
  %1358 = vmatprep.subr.bf16.mxu0 0
  %1359 = vmatpush1.bf16.msra.mxu0 0
  %1360 = vmatprep.subr.bf16.mxu0 0
  %1361 = vmatpush1.bf16.msra.mxu0 0
  %1362 = vmatprep.subr.bf16.mxu0 0
  %1363 = vmatpush1.bf16.msra.mxu0 0
  %1364 = vmatprep.subr.bf16.mxu0 0
  %1365 = vmatpush1.bf16.msra.mxu0 0
  %1366 = vmatprep.mubr.bf16.mxu0 0
  %1367 = vmatmul.mubr.bf16.gmra.mrb[0].mxu0 %v1332
  %v1368 = vpop.f32.mrb[0].mxu0
  %v1369 = vadd.f32 %v247, %v1368
  %v1370 = vpop.f32.mrb[0].mxu0
  %v1371 = vpop.f32.mrb[0].mxu0
  %v1372 = vpop.f32.mrb[0].mxu0
  %1373 = vdwg.mxu0
  %v1374 = vxor.u32 %v1369, 2147483648
  %v1375 = vmul.f32 %v1374, 1.442695
  %v1376 = vpow.pop %v1375
  %v1377 = vadd.f32 %v1376, 1.0
  %v1378 = vrcp.pop %v1377
  %v1379 = vmul.f32 1.0, %v1378
  %v1380 = vmul.f32 %v1379, 2.0
  %v1381 = vsub.f32 %v1380, 1.0
  %v1382 = vmul.f32 %v1379, %v1241
  %1384 = vrot.lane.b32.xlu0 %v1381, 64
  %v1385 = vpop.permute.xlu0 %1384
  %v1387 = vmul.f32 %v1379, %v1385
  %1389 = vrot.lane.b32.xlu0 %v1387, 32
  %v1390 = vpop.permute.xlu0 %1389
  %v1392 = vadd.f32 %v1382, %v1390
  %v1393 = vtanh.pop %v1392
  %1395 = vrot.lane.b32.xlu0 %v1393, 64
  %v1396 = vpop.permute.xlu0 %1395
  %v1398 = vmul.f32 %v1379, %v1396
  %v1399 = vmax.f32 %v1398, 0.0
  %v1400 = vpack.c.bf16 %v1399, %v1399
  %v1401 = vld [vmem:[%s6] sm:$0xf]
  %v1402 = vld [vmem:[%s6 + $0x4] sm:$0xf]
  %v1403 = vld [vmem:[%s6 + $0x8] sm:$0xf]
  %v1404 = vld [vmem:[%s6 + $0xc] sm:$0xf]
  %v1405 = vld [vmem:[%s7] sm:$0x1]
  %v1407 = vlaneseq
  %v1408 = vshrl.u32 %v1407, 7
  %v1409 = vsub.s32 0, %v1408
  %v1410 = vrot.slane %v1405, %v1409
  %1413 = vrot.lane.b32.xlu0 %v1400, 32
  %v1414 = vpop.permute.xlu0 %1413
  %v1419 = vunpack.c.l.b16 %v1401
  %v1420 = vunpack.c.l.b16 %v1402
  %v1421 = vunpack.c.l.b16 %v1403
  %v1422 = vunpack.c.l.b16 %v1404
  %v1423 = vpack.c.b16 %v1420, %v1419
  %v1424 = vpack.c.b16 %v1422, %v1421
  %v1428 = vsel %vm65, %v1414, 0
  %1430 = vmatprep.subr.bf16.mxu0 0
  %1431 = vmatpush1.bf16.msra.mxu0 %v1423
  %1432 = vmatprep.subr.bf16.mxu0 0
  %1433 = vmatpush1.bf16.msra.mxu0 %v1424
  %1434 = vmatprep.subr.bf16.mxu0 0
  %1435 = vmatpush1.bf16.msra.mxu0 0
  %1436 = vmatprep.subr.bf16.mxu0 0
  %1437 = vmatpush1.bf16.msra.mxu0 0
  %1438 = vmatprep.subr.bf16.mxu0 0
  %1439 = vmatpush1.bf16.msra.mxu0 0
  %1440 = vmatprep.subr.bf16.mxu0 0
  %1441 = vmatpush1.bf16.msra.mxu0 0
  %1442 = vmatprep.subr.bf16.mxu0 0
  %1443 = vmatpush1.bf16.msra.mxu0 0
  %1444 = vmatprep.subr.bf16.mxu0 0
  %1445 = vmatpush1.bf16.msra.mxu0 0
  %1446 = vmatprep.subr.bf16.mxu0 0
  %1447 = vmatpush1.bf16.msra.mxu0 0
  %1448 = vmatprep.subr.bf16.mxu0 0
  %1449 = vmatpush1.bf16.msra.mxu0 0
  %1450 = vmatprep.subr.bf16.mxu0 0
  %1451 = vmatpush1.bf16.msra.mxu0 0
  %1452 = vmatprep.subr.bf16.mxu0 0
  %1453 = vmatpush1.bf16.msra.mxu0 0
  %1454 = vmatprep.subr.bf16.mxu0 0
  %1455 = vmatpush1.bf16.msra.mxu0 0
  %1456 = vmatprep.subr.bf16.mxu0 0
  %1457 = vmatpush1.bf16.msra.mxu0 0
  %1458 = vmatprep.subr.bf16.mxu0 0
  %1459 = vmatpush1.bf16.msra.mxu0 0
  %1460 = vmatprep.subr.bf16.mxu0 0
  %1461 = vmatpush1.bf16.msra.mxu0 0
  %1462 = vmatprep.mubr.bf16.mxu0 0
  %1463 = vmatmul.mubr.bf16.gmra.mrb[0].mxu0 %v1428
  %v1464 = vpop.f32.mrb[0].mxu0
  %v1465 = vadd.f32 %v1410, %v1464
  %v1466 = vpop.f32.mrb[0].mxu0
  %v1467 = vpop.f32.mrb[0].mxu0
  %v1468 = vpop.f32.mrb[0].mxu0
  %1469 = vdwg.mxu0
  %vm1470 = vcmask 130048
  %1471 = vst.msk [vmem:[%s8] sm:$0xff] %vm1470, %v1465
  // Predicated region
  $region34: #{decoder_forward.1} parent=0 // pred_check
    _
  $region35: #{decoder_forward.1} parent=0 // pred_check_branch
    %1473 = sbr.rel (0) target = $region37
  $region36: #{decoder_forward.1} parent=0 // pred_region
    _
  $region37: #{decoder_forward.1} parent=0 // pred_fallthru
    _
  // Predicated region
  $region38: #{decoder_forward.1} parent=0 // pred_check
    _
  $region39: #{decoder_forward.1} parent=0 // pred_check_branch
    %1475 = sbr.rel (0) target = $region41
  $region40: #{decoder_forward.1} parent=0 // pred_region
    _
  $region41: #{decoder_forward.1} parent=0 // pred_fallthru
    _

</llo_original>
